<compile_context>
chip_gen: v7x
topology: tpu7x:2x2x1
jax: 0.10.0
libtpu: 0.0.40
codegen_flags: <defaults>
</compile_context>

<pallas_src>
import functools

import jax
import jax.numpy as jnp
from jax import lax
from jax.experimental import pallas as pl
from jax.experimental.pallas import tpu as pltpu  # noqa: F401  (TPU backend)


# ----------------------------------------------------------------------------
# Pallas kernel: whole sequence in one invocation, fully unrolled wavefront.
# ----------------------------------------------------------------------------
def _lstm_rnn_kernel(
    pre_ref,       # (T*B, 8H) per-token pregates: layer-0 input proj (+b0)
                   #           interleaved with layer-1 bias b1
    hcat_ref,      # (B, 2H)   packed initial hidden state [h0 | h1]
    ccat_ref,      # (B, 2H)   packed initial cell state   [c0 | c1]
    w_blk_ref,     # (2H, 8H)  block/interleaved recurrent weight
    w_lin_ref,     # (H, Vp)   final linear weight (vocab padded to 128 lanes)
    b_lin_ref,     # (1, Vp)   final linear bias (padded)
    logits_ref,    # (B, Vp)   out: last-timestep logits (padded)
    hcat_out_ref,  # (B, 2H)   out: packed final hidden state
    ccat_out_ref,  # (B, 2H)   out: packed final cell state
):
    TB, _ = pre_ref.shape
    B, H2 = hcat_ref.shape
    H = H2 // 2
    G2 = 2 * H
    T = TB // B

    # Everything resident in vregs for the whole recurrence.
    pre = pre_ref[...]            # (T*B, 8H)
    w_blk = w_blk_ref[...]        # (2H, 8H)
    hcat = hcat_ref[...]          # (B, 2H) = [h0 | h1]
    ccat = ccat_ref[...]          # (B, 2H) = [c0 | c1]

    lane = lax.broadcasted_iota(jnp.int32, (B, G2), 1)
    is_l0 = lane < H              # layer-0 lanes of the packed state

    def cell(hc, cc, pre_k):
        # One fused MXU push per step: [h0_t | h1_{t-1}] @ blockdiag-ish W
        # Output lanes (interleaved, H wide each): i0,i1,f0,f1,g0,g1,o0,o1.
        gates = jnp.dot(hc, w_blk, preferred_element_type=jnp.float32) + pre_k
        i = jax.nn.sigmoid(gates[:, 0 * G2:1 * G2])   # [i0 | i1]
        f = jax.nn.sigmoid(gates[:, 1 * G2:2 * G2])   # [f0 | f1]
        g = jnp.tanh(gates[:, 2 * G2:3 * G2])         # [g0 | g1]
        o = jax.nn.sigmoid(gates[:, 3 * G2:4 * G2])   # [o0 | o1]
        cc_new = f * cc + i * g                       # both layers at once
        hc_new = o * jnp.tanh(cc_new)                 # packed [h0' | h1']
        return hc_new, cc_new

    # ---- prologue: layer-0 step 0 only (layer-1 half of the result is a
    # "step -1" and is masked back to the initial state) ----
    h_p, c_p = cell(hcat, ccat, pre[0:B])
    hcat = jnp.where(is_l0, h_p, hcat)
    ccat = jnp.where(is_l0, c_p, ccat)

    # ---- steady-state wavefront: iteration k computes layer-0 step k and
    # layer-1 step k-1 (fully unrolled, static slices of `pre`) ----
    for k in range(1, T):
        hcat, ccat = cell(hcat, ccat, pre[k * B:(k + 1) * B])

    # ---- epilogue: layer-1 step T-1 only (layer-0 half would be step T and
    # is discarded; the layer-1 lanes of pre[T-1] are just b1) ----
    h_e, c_e = cell(hcat, ccat, pre[(T - 1) * B:T * B])
    hcat_fin = jnp.where(is_l0, hcat, h_e)
    ccat_fin = jnp.where(is_l0, ccat, c_e)

    # Final linear projection on the last timestep's top-layer hidden state.
    h1_last = h_e[:, H:2 * H]
    logits_ref[...] = (
        jnp.dot(h1_last, w_lin_ref[...], preferred_element_type=jnp.float32)
        + b_lin_ref[...]
    )
    hcat_out_ref[...] = hcat_fin
    ccat_out_ref[...] = ccat_fin


# ----------------------------------------------------------------------------
# One-time parameter preparation (hoisted out of the per-call path).
# ----------------------------------------------------------------------------
def prepare_params(params):
    H = params["w_hh0"].shape[0]
    V = params["w_lin"].shape[1]
    Vp = max(128, pl.cdiv(V, 128) * 128)

    def interleave(a0, a1):
        # (..., 4H) x (..., 4H)  ->  (..., 8H) laid out [i0,i1,f0,f1,g0,g1,o0,o1]
        lead = a0.shape[:-1]
        a0r = a0.reshape(*lead, 4, H)
        a1r = a1.reshape(*lead, 4, H)
        return jnp.stack([a0r, a1r], axis=-2).reshape(*lead, 8 * H)

    # Fused recurrent weight: rows [0:H) multiply h0_t, rows [H:2H) multiply
    # h1_{t-1}.  Layer-0 gate columns come from w_hh0 (h1 contribution = 0);
    # layer-1 gate columns come from w_ih1 (h0 rows) and w_hh1 (h1 rows).
    top = interleave(params["w_hh0"], params["w_ih1"])                      # (H, 8H)
    bot = interleave(jnp.zeros_like(params["w_hh0"]), params["w_hh1"])      # (H, 8H)
    w_blk = jnp.concatenate([top, bot], axis=0).astype(jnp.float32)         # (2H, 8H)

    # Per-token pregates lookup: embedding folded with w_ih0/b0 (layer-0
    # lanes) and b1 (layer-1 lanes).
    xg_table = params["embedding"] @ params["w_ih0"] + params["b0"]         # (V, 4H)
    b1_bcast = jnp.broadcast_to(params["b1"], xg_table.shape)               # (V, 4H)
    pre_table = interleave(xg_table, b1_bcast).astype(jnp.float32)          # (V, 8H)

    # Lane-dense padded final projection.
    w_lin_p = jnp.zeros((H, Vp), jnp.float32).at[:, :V].set(params["w_lin"])
    b_lin_p = jnp.zeros((1, Vp), jnp.float32).at[:, :V].set(params["b_lin"])

    return {
        "pre_table": pre_table,
        "w_blk": w_blk,
        "w_lin_p": w_lin_p,
        "b_lin_p": b_lin_p,
    }


# ----------------------------------------------------------------------------
# Forward wrapper: gather + layout glue + single pallas_call (no grid).
# ----------------------------------------------------------------------------
@functools.partial(jax.jit, static_argnums=(3,))
def rnn_forward(nn_input, hidden, prep, vocab_size):
    """nn_input: (B, T) int32 token ids; hidden: (h, c) each (2, B, H)."""
    h_init, c_init = hidden
    n_layers, B, H = h_init.shape
    assert n_layers == 2, "kernel hard-wires a 2-layer LSTM"
    T = nn_input.shape[1]
    Vp = prep["w_lin_p"].shape[1]

    # Gather pregates per token, time-major flattened over (T, B).
    pre = jnp.take(prep["pre_table"], nn_input, axis=0)            # (B, T, 8H)
    pre = jnp.transpose(pre, (1, 0, 2)).reshape(T * B, 8 * H)

    # Pack the per-layer hidden/cell state along lanes: [layer0 | layer1].
    hcat0 = jnp.transpose(h_init, (1, 0, 2)).reshape(B, 2 * H).astype(jnp.float32)
    ccat0 = jnp.transpose(c_init, (1, 0, 2)).reshape(B, 2 * H).astype(jnp.float32)

    logits_p, hcat, ccat = pl.pallas_call(
        _lstm_rnn_kernel,
        out_shape=(
            jax.ShapeDtypeStruct((B, Vp), jnp.float32),
            jax.ShapeDtypeStruct((B, 2 * H), jnp.float32),
            jax.ShapeDtypeStruct((B, 2 * H), jnp.float32),
        ),
    )(pre, hcat0, ccat0, prep["w_blk"], prep["w_lin_p"], prep["b_lin_p"])

    h_out = jnp.transpose(hcat.reshape(B, 2, H), (1, 0, 2))
    c_out = jnp.transpose(ccat.reshape(B, 2, H), (1, 0, 2))
    return logits_p[:, :vocab_size], (h_out, c_out)


# ----------------------------------------------------------------------------
# Pure-JAX reference (same math) for correctness verification.
# ----------------------------------------------------------------------------
def rnn_reference(nn_input, hidden, params):
    h_init, c_init = hidden
    emb = jnp.take(params["embedding"], nn_input, axis=0)
    x = jnp.transpose(emb, (1, 0, 2)).astype(jnp.float32)  # (T, B, E)

    def run_layer(x_seq, h0, c0, w_ih, w_hh, b):
        def step(carry, x_t):
            h, c = carry
            gates = x_t @ w_ih + h @ w_hh + b
            i, f, g, o = jnp.split(gates, 4, axis=-1)
            i, f, o = jax.nn.sigmoid(i), jax.nn.sigmoid(f), jax.nn.sigmoid(o)
            g = jnp.tanh(g)
            c_new = f * c + i * g
            h_new = o * jnp.tanh(c_new)
            return (h_new, c_new), h_new
        (hT, cT), ys = jax.lax.scan(step, (h0, c0), x_seq)
        return ys, hT, cT

    y0, h0T, c0T = run_layer(x, h_init[0], c_init[0],
                             params["w_ih0"], params["w_hh0"], params["b0"][0])
    y1, h1T, c1T = run_layer(y0, h_init[1], c_init[1],
                             params["w_ih1"], params["w_hh1"], params["b1"][0])
    logits = y1[-1] @ params["w_lin"] + params["b_lin"][0]
    return logits, (jnp.stack([h0T, h1T]), jnp.stack([c0T, c1T]))


# ----------------------------------------------------------------------------
# Deterministic parameter init (shapes from the module's __init__).
# ----------------------------------------------------------------------------
def init_params(key, vocab_size, embedding_dim, hidden_dim):
    ks = jax.random.split(key, 8)
    s = 1.0 / jnp.sqrt(hidden_dim)
    u = lambda k, shape: jax.random.uniform(k, shape, jnp.float32, -s, s)
    return {
        "embedding": jax.random.normal(ks[0], (vocab_size, embedding_dim),
                                       jnp.float32),
        # weights stored pre-transposed: x @ W form
        "w_ih0": u(ks[1], (embedding_dim, 4 * hidden_dim)),
        "w_hh0": u(ks[2], (hidden_dim, 4 * hidden_dim)),
        "b0":    u(ks[3], (1, 4 * hidden_dim)),   # = b_ih_l0 + b_hh_l0 folded
        "w_ih1": u(ks[4], (hidden_dim, 4 * hidden_dim)),
        "w_hh1": u(ks[5], (hidden_dim, 4 * hidden_dim)),
        "b1":    u(ks[6], (1, 4 * hidden_dim)),   # = b_ih_l1 + b_hh_l1 folded
        "w_lin": u(ks[7], (hidden_dim, vocab_size)),
        "b_lin": jnp.zeros((1, vocab_size), jnp.float32),
    }


if __name__ == "__main__":
    # Small shapes consistent with the module: vocab/output = 40, E = 32,
    # H = 32, n_layers = 2 (hard-wired in the kernel), batch = 8, seq = 8.
    vocab_size = 40
    embedding_dim = 32
    hidden_dim = 32
    n_layers = 2
    batch = 8
    seq = 8

    key = jax.random.PRNGKey(0)
    k_tok, k_params = jax.random.split(key)

    nn_input = jax.random.randint(k_tok, (batch, seq), 0, vocab_size,
                                  dtype=jnp.int32)
    params = init_params(k_params, vocab_size, embedding_dim, hidden_dim)
    prep = prepare_params(params)          # one-time weight prep (hoisted)

    # init_hidden(batch): zeros of shape (n_layers, batch, hidden_dim)
    hidden = (
        jnp.zeros((n_layers, batch, hidden_dim), jnp.float32),
        jnp.zeros((n_layers, batch, hidden_dim), jnp.float32),
    )

    out, (h_n, c_n) = jax.block_until_ready(
        rnn_forward(nn_input, hidden, prep, vocab_size))

    ref_out, (ref_h, ref_c) = rnn_reference(nn_input, hidden, params)

    assert out.shape == (batch, vocab_size)
    assert h_n.shape == (n_layers, batch, hidden_dim)
    assert c_n.shape == (n_layers, batch, hidden_dim)
    assert jnp.allclose(out, ref_out, atol=1e-4, rtol=1e-4)
    assert jnp.allclose(h_n, ref_h, atol=1e-4, rtol=1e-4)
    assert jnp.allclose(c_n, ref_c, atol=1e-4, rtol=1e-4)

    print("KERNEL_OK")
</pallas_src>

<mosaic_0001>
module attributes {stable_mosaic.version = 11 : i64} {
  func.func @_lstm_rnn_kernel(%arg0: memref<64x256xf32, #tpu.memory_space<vmem>>, %arg1: memref<8x64xf32, #tpu.memory_space<vmem>>, %arg2: memref<8x64xf32, #tpu.memory_space<vmem>>, %arg3: memref<64x256xf32, #tpu.memory_space<vmem>>, %arg4: memref<32x128xf32, #tpu.memory_space<vmem>>, %arg5: memref<1x128xf32, #tpu.memory_space<vmem>>, %arg6: memref<8x128xf32, #tpu.memory_space<vmem>>, %arg7: memref<8x64xf32, #tpu.memory_space<vmem>>, %arg8: memref<8x64xf32, #tpu.memory_space<vmem>>) attributes {dimension_semantics = [], scalar_prefetch = 0 : i64, scratch_operands = 0 : i64, tpu.core_type = #tpu.core_type<tc>} {
    %c0 = arith.constant 0 : index
    %c0_0 = arith.constant 0 : index
    %0 = vector.load %arg0[%c0, %c0_0] : memref<64x256xf32, #tpu.memory_space<vmem>>, vector<64x256xf32>
    %c0_1 = arith.constant 0 : index
    %c0_2 = arith.constant 0 : index
    %1 = vector.load %arg3[%c0_1, %c0_2] : memref<64x256xf32, #tpu.memory_space<vmem>>, vector<64x256xf32>
    %c0_3 = arith.constant 0 : index
    %c0_4 = arith.constant 0 : index
    %2 = vector.load %arg1[%c0_3, %c0_4] : memref<8x64xf32, #tpu.memory_space<vmem>>, vector<8x64xf32>
    %c0_5 = arith.constant 0 : index
    %c0_6 = arith.constant 0 : index
    %3 = vector.load %arg2[%c0_5, %c0_6] : memref<8x64xf32, #tpu.memory_space<vmem>>, vector<8x64xf32>
    %4 = tpu.iota {dimensions = array<i32: 1>} : vector<8x64xi32>
    %c32_i32 = arith.constant 32 : i32
    %5 = vector.broadcast %c32_i32 : i32 to vector<8x64xi32>
    %6 = arith.cmpi slt, %4, %5 : vector<8x64xi32>
    %7 = vector.extract_strided_slice %0 {offsets = [0, 0], sizes = [8, 256], strides = [1, 1]} : vector<64x256xf32> to vector<8x256xf32>
    %cst = arith.constant dense<0.000000e+00> : vector<8x256xf32>
    %8 = tpu.matmul %2, %1, %cst {dimension_numbers = #tpu.dot_dimension_numbers<[1], [0], [0], [1], [0, 0, 1, 1], [], []>} : vector<8x64xf32>, vector<64x256xf32>, vector<8x256xf32> -> vector<8x256xf32>
    %9 = arith.addf %8, %7 : vector<8x256xf32>
    %10 = vector.extract_strided_slice %9 {offsets = [0, 0], sizes = [8, 64], strides = [1, 1]} : vector<8x256xf32> to vector<8x64xf32>
    %11 = arith.negf %10 : vector<8x64xf32>
    %12 = math.exp %11 : vector<8x64xf32>
    %cst_7 = arith.constant 1.000000e+00 : f32
    %13 = vector.broadcast %cst_7 : f32 to vector<8x64xf32>
    %14 = arith.addf %13, %12 : vector<8x64xf32>
    %15 = arith.divf %13, %14 : vector<8x64xf32>
    %16 = vector.extract_strided_slice %9 {offsets = [0, 64], sizes = [8, 64], strides = [1, 1]} : vector<8x256xf32> to vector<8x64xf32>
    %17 = arith.negf %16 : vector<8x64xf32>
    %18 = math.exp %17 : vector<8x64xf32>
    %cst_8 = arith.constant 1.000000e+00 : f32
    %19 = vector.broadcast %cst_8 : f32 to vector<8x64xf32>
    %20 = arith.addf %19, %18 : vector<8x64xf32>
    %21 = arith.divf %19, %20 : vector<8x64xf32>
    %22 = vector.extract_strided_slice %9 {offsets = [0, 128], sizes = [8, 64], strides = [1, 1]} : vector<8x256xf32> to vector<8x64xf32>
    %23 = math.tanh %22 : vector<8x64xf32>
    %24 = vector.extract_strided_slice %9 {offsets = [0, 192], sizes = [8, 64], strides = [1, 1]} : vector<8x256xf32> to vector<8x64xf32>
    %25 = arith.negf %24 : vector<8x64xf32>
    %26 = math.exp %25 : vector<8x64xf32>
    %cst_9 = arith.constant 1.000000e+00 : f32
    %27 = vector.broadcast %cst_9 : f32 to vector<8x64xf32>
    %28 = arith.addf %27, %26 : vector<8x64xf32>
    %29 = arith.divf %27, %28 : vector<8x64xf32>
    %30 = arith.mulf %21, %3 : vector<8x64xf32>
    %31 = arith.mulf %15, %23 : vector<8x64xf32>
    %32 = arith.addf %30, %31 : vector<8x64xf32>
    %33 = math.tanh %32 : vector<8x64xf32>
    %34 = arith.mulf %29, %33 : vector<8x64xf32>
    %35 = arith.select %6, %34, %2 : vector<8x64xi1>, vector<8x64xf32>
    %36 = arith.select %6, %32, %3 : vector<8x64xi1>, vector<8x64xf32>
    %37 = vector.extract_strided_slice %0 {offsets = [8, 0], sizes = [8, 256], strides = [1, 1]} : vector<64x256xf32> to vector<8x256xf32>
    %cst_10 = arith.constant dense<0.000000e+00> : vector<8x256xf32>
    %38 = tpu.matmul %35, %1, %cst_10 {dimension_numbers = #tpu.dot_dimension_numbers<[1], [0], [0], [1], [0, 0, 1, 1], [], []>} : vector<8x64xf32>, vector<64x256xf32>, vector<8x256xf32> -> vector<8x256xf32>
    %39 = arith.addf %38, %37 : vector<8x256xf32>
    %40 = vector.extract_strided_slice %39 {offsets = [0, 0], sizes = [8, 64], strides = [1, 1]} : vector<8x256xf32> to vector<8x64xf32>
    %41 = arith.negf %40 : vector<8x64xf32>
    %42 = math.exp %41 : vector<8x64xf32>
    %cst_11 = arith.constant 1.000000e+00 : f32
    %43 = vector.broadcast %cst_11 : f32 to vector<8x64xf32>
    %44 = arith.addf %43, %42 : vector<8x64xf32>
    %45 = arith.divf %43, %44 : vector<8x64xf32>
    %46 = vector.extract_strided_slice %39 {offsets = [0, 64], sizes = [8, 64], strides = [1, 1]} : vector<8x256xf32> to vector<8x64xf32>
    %47 = arith.negf %46 : vector<8x64xf32>
    %48 = math.exp %47 : vector<8x64xf32>
    %cst_12 = arith.constant 1.000000e+00 : f32
    %49 = vector.broadcast %cst_12 : f32 to vector<8x64xf32>
    %50 = arith.addf %49, %48 : vector<8x64xf32>
    %51 = arith.divf %49, %50 : vector<8x64xf32>
    %52 = vector.extract_strided_slice %39 {offsets = [0, 128], sizes = [8, 64], strides = [1, 1]} : vector<8x256xf32> to vector<8x64xf32>
    %53 = math.tanh %52 : vector<8x64xf32>
    %54 = vector.extract_strided_slice %39 {offsets = [0, 192], sizes = [8, 64], strides = [1, 1]} : vector<8x256xf32> to vector<8x64xf32>
    %55 = arith.negf %54 : vector<8x64xf32>
    %56 = math.exp %55 : vector<8x64xf32>
    %cst_13 = arith.constant 1.000000e+00 : f32
    %57 = vector.broadcast %cst_13 : f32 to vector<8x64xf32>
    %58 = arith.addf %57, %56 : vector<8x64xf32>
    %59 = arith.divf %57, %58 : vector<8x64xf32>
    %60 = arith.mulf %51, %36 : vector<8x64xf32>
    %61 = arith.mulf %45, %53 : vector<8x64xf32>
    %62 = arith.addf %60, %61 : vector<8x64xf32>
    %63 = math.tanh %62 : vector<8x64xf32>
    %64 = arith.mulf %59, %63 : vector<8x64xf32>
    %65 = vector.extract_strided_slice %0 {offsets = [16, 0], sizes = [8, 256], strides = [1, 1]} : vector<64x256xf32> to vector<8x256xf32>
    %cst_14 = arith.constant dense<0.000000e+00> : vector<8x256xf32>
    %66 = tpu.matmul %64, %1, %cst_14 {dimension_numbers = #tpu.dot_dimension_numbers<[1], [0], [0], [1], [0, 0, 1, 1], [], []>} : vector<8x64xf32>, vector<64x256xf32>, vector<8x256xf32> -> vector<8x256xf32>
    %67 = arith.addf %66, %65 : vector<8x256xf32>
    %68 = vector.extract_strided_slice %67 {offsets = [0, 0], sizes = [8, 64], strides = [1, 1]} : vector<8x256xf32> to vector<8x64xf32>
    %69 = arith.negf %68 : vector<8x64xf32>
    %70 = math.exp %69 : vector<8x64xf32>
    %cst_15 = arith.constant 1.000000e+00 : f32
    %71 = vector.broadcast %cst_15 : f32 to vector<8x64xf32>
    %72 = arith.addf %71, %70 : vector<8x64xf32>
    %73 = arith.divf %71, %72 : vector<8x64xf32>
    %74 = vector.extract_strided_slice %67 {offsets = [0, 64], sizes = [8, 64], strides = [1, 1]} : vector<8x256xf32> to vector<8x64xf32>
    %75 = arith.negf %74 : vector<8x64xf32>
    %76 = math.exp %75 : vector<8x64xf32>
    %cst_16 = arith.constant 1.000000e+00 : f32
    %77 = vector.broadcast %cst_16 : f32 to vector<8x64xf32>
    %78 = arith.addf %77, %76 : vector<8x64xf32>
    %79 = arith.divf %77, %78 : vector<8x64xf32>
    %80 = vector.extract_strided_slice %67 {offsets = [0, 128], sizes = [8, 64], strides = [1, 1]} : vector<8x256xf32> to vector<8x64xf32>
    %81 = math.tanh %80 : vector<8x64xf32>
    %82 = vector.extract_strided_slice %67 {offsets = [0, 192], sizes = [8, 64], strides = [1, 1]} : vector<8x256xf32> to vector<8x64xf32>
    %83 = arith.negf %82 : vector<8x64xf32>
    %84 = math.exp %83 : vector<8x64xf32>
    %cst_17 = arith.constant 1.000000e+00 : f32
    %85 = vector.broadcast %cst_17 : f32 to vector<8x64xf32>
    %86 = arith.addf %85, %84 : vector<8x64xf32>
    %87 = arith.divf %85, %86 : vector<8x64xf32>
    %88 = arith.mulf %79, %62 : vector<8x64xf32>
    %89 = arith.mulf %73, %81 : vector<8x64xf32>
    %90 = arith.addf %88, %89 : vector<8x64xf32>
    %91 = math.tanh %90 : vector<8x64xf32>
    %92 = arith.mulf %87, %91 : vector<8x64xf32>
    %93 = vector.extract_strided_slice %0 {offsets = [24, 0], sizes = [8, 256], strides = [1, 1]} : vector<64x256xf32> to vector<8x256xf32>
    %cst_18 = arith.constant dense<0.000000e+00> : vector<8x256xf32>
    %94 = tpu.matmul %92, %1, %cst_18 {dimension_numbers = #tpu.dot_dimension_numbers<[1], [0], [0], [1], [0, 0, 1, 1], [], []>} : vector<8x64xf32>, vector<64x256xf32>, vector<8x256xf32> -> vector<8x256xf32>
    %95 = arith.addf %94, %93 : vector<8x256xf32>
    %96 = vector.extract_strided_slice %95 {offsets = [0, 0], sizes = [8, 64], strides = [1, 1]} : vector<8x256xf32> to vector<8x64xf32>
    %97 = arith.negf %96 : vector<8x64xf32>
    %98 = math.exp %97 : vector<8x64xf32>
    %cst_19 = arith.constant 1.000000e+00 : f32
    %99 = vector.broadcast %cst_19 : f32 to vector<8x64xf32>
    %100 = arith.addf %99, %98 : vector<8x64xf32>
    %101 = arith.divf %99, %100 : vector<8x64xf32>
    %102 = vector.extract_strided_slice %95 {offsets = [0, 64], sizes = [8, 64], strides = [1, 1]} : vector<8x256xf32> to vector<8x64xf32>
    %103 = arith.negf %102 : vector<8x64xf32>
    %104 = math.exp %103 : vector<8x64xf32>
    %cst_20 = arith.constant 1.000000e+00 : f32
    %105 = vector.broadcast %cst_20 : f32 to vector<8x64xf32>
    %106 = arith.addf %105, %104 : vector<8x64xf32>
    %107 = arith.divf %105, %106 : vector<8x64xf32>
    %108 = vector.extract_strided_slice %95 {offsets = [0, 128], sizes = [8, 64], strides = [1, 1]} : vector<8x256xf32> to vector<8x64xf32>
    %109 = math.tanh %108 : vector<8x64xf32>
    %110 = vector.extract_strided_slice %95 {offsets = [0, 192], sizes = [8, 64], strides = [1, 1]} : vector<8x256xf32> to vector<8x64xf32>
    %111 = arith.negf %110 : vector<8x64xf32>
    %112 = math.exp %111 : vector<8x64xf32>
    %cst_21 = arith.constant 1.000000e+00 : f32
    %113 = vector.broadcast %cst_21 : f32 to vector<8x64xf32>
    %114 = arith.addf %113, %112 : vector<8x64xf32>
    %115 = arith.divf %113, %114 : vector<8x64xf32>
    %116 = arith.mulf %107, %90 : vector<8x64xf32>
    %117 = arith.mulf %101, %109 : vector<8x64xf32>
    %118 = arith.addf %116, %117 : vector<8x64xf32>
    %119 = math.tanh %118 : vector<8x64xf32>
    %120 = arith.mulf %115, %119 : vector<8x64xf32>
    %121 = vector.extract_strided_slice %0 {offsets = [32, 0], sizes = [8, 256], strides = [1, 1]} : vector<64x256xf32> to vector<8x256xf32>
    %cst_22 = arith.constant dense<0.000000e+00> : vector<8x256xf32>
    %122 = tpu.matmul %120, %1, %cst_22 {dimension_numbers = #tpu.dot_dimension_numbers<[1], [0], [0], [1], [0, 0, 1, 1], [], []>} : vector<8x64xf32>, vector<64x256xf32>, vector<8x256xf32> -> vector<8x256xf32>
    %123 = arith.addf %122, %121 : vector<8x256xf32>
    %124 = vector.extract_strided_slice %123 {offsets = [0, 0], sizes = [8, 64], strides = [1, 1]} : vector<8x256xf32> to vector<8x64xf32>
    %125 = arith.negf %124 : vector<8x64xf32>
    %126 = math.exp %125 : vector<8x64xf32>
    %cst_23 = arith.constant 1.000000e+00 : f32
    %127 = vector.broadcast %cst_23 : f32 to vector<8x64xf32>
    %128 = arith.addf %127, %126 : vector<8x64xf32>
    %129 = arith.divf %127, %128 : vector<8x64xf32>
    %130 = vector.extract_strided_slice %123 {offsets = [0, 64], sizes = [8, 64], strides = [1, 1]} : vector<8x256xf32> to vector<8x64xf32>
    %131 = arith.negf %130 : vector<8x64xf32>
    %132 = math.exp %131 : vector<8x64xf32>
    %cst_24 = arith.constant 1.000000e+00 : f32
    %133 = vector.broadcast %cst_24 : f32 to vector<8x64xf32>
    %134 = arith.addf %133, %132 : vector<8x64xf32>
    %135 = arith.divf %133, %134 : vector<8x64xf32>
    %136 = vector.extract_strided_slice %123 {offsets = [0, 128], sizes = [8, 64], strides = [1, 1]} : vector<8x256xf32> to vector<8x64xf32>
    %137 = math.tanh %136 : vector<8x64xf32>
    %138 = vector.extract_strided_slice %123 {offsets = [0, 192], sizes = [8, 64], strides = [1, 1]} : vector<8x256xf32> to vector<8x64xf32>
    %139 = arith.negf %138 : vector<8x64xf32>
    %140 = math.exp %139 : vector<8x64xf32>
    %cst_25 = arith.constant 1.000000e+00 : f32
    %141 = vector.broadcast %cst_25 : f32 to vector<8x64xf32>
    %142 = arith.addf %141, %140 : vector<8x64xf32>
    %143 = arith.divf %141, %142 : vector<8x64xf32>
    %144 = arith.mulf %135, %118 : vector<8x64xf32>
    %145 = arith.mulf %129, %137 : vector<8x64xf32>
    %146 = arith.addf %144, %145 : vector<8x64xf32>
    %147 = math.tanh %146 : vector<8x64xf32>
    %148 = arith.mulf %143, %147 : vector<8x64xf32>
    %149 = vector.extract_strided_slice %0 {offsets = [40, 0], sizes = [8, 256], strides = [1, 1]} : vector<64x256xf32> to vector<8x256xf32>
    %cst_26 = arith.constant dense<0.000000e+00> : vector<8x256xf32>
    %150 = tpu.matmul %148, %1, %cst_26 {dimension_numbers = #tpu.dot_dimension_numbers<[1], [0], [0], [1], [0, 0, 1, 1], [], []>} : vector<8x64xf32>, vector<64x256xf32>, vector<8x256xf32> -> vector<8x256xf32>
    %151 = arith.addf %150, %149 : vector<8x256xf32>
    %152 = vector.extract_strided_slice %151 {offsets = [0, 0], sizes = [8, 64], strides = [1, 1]} : vector<8x256xf32> to vector<8x64xf32>
    %153 = arith.negf %152 : vector<8x64xf32>
    %154 = math.exp %153 : vector<8x64xf32>
    %cst_27 = arith.constant 1.000000e+00 : f32
    %155 = vector.broadcast %cst_27 : f32 to vector<8x64xf32>
    %156 = arith.addf %155, %154 : vector<8x64xf32>
    %157 = arith.divf %155, %156 : vector<8x64xf32>
    %158 = vector.extract_strided_slice %151 {offsets = [0, 64], sizes = [8, 64], strides = [1, 1]} : vector<8x256xf32> to vector<8x64xf32>
    %159 = arith.negf %158 : vector<8x64xf32>
    %160 = math.exp %159 : vector<8x64xf32>
    %cst_28 = arith.constant 1.000000e+00 : f32
    %161 = vector.broadcast %cst_28 : f32 to vector<8x64xf32>
    %162 = arith.addf %161, %160 : vector<8x64xf32>
    %163 = arith.divf %161, %162 : vector<8x64xf32>
    %164 = vector.extract_strided_slice %151 {offsets = [0, 128], sizes = [8, 64], strides = [1, 1]} : vector<8x256xf32> to vector<8x64xf32>
    %165 = math.tanh %164 : vector<8x64xf32>
    %166 = vector.extract_strided_slice %151 {offsets = [0, 192], sizes = [8, 64], strides = [1, 1]} : vector<8x256xf32> to vector<8x64xf32>
    %167 = arith.negf %166 : vector<8x64xf32>
    %168 = math.exp %167 : vector<8x64xf32>
    %cst_29 = arith.constant 1.000000e+00 : f32
    %169 = vector.broadcast %cst_29 : f32 to vector<8x64xf32>
    %170 = arith.addf %169, %168 : vector<8x64xf32>
    %171 = arith.divf %169, %170 : vector<8x64xf32>
    %172 = arith.mulf %163, %146 : vector<8x64xf32>
    %173 = arith.mulf %157, %165 : vector<8x64xf32>
    %174 = arith.addf %172, %173 : vector<8x64xf32>
    %175 = math.tanh %174 : vector<8x64xf32>
    %176 = arith.mulf %171, %175 : vector<8x64xf32>
    %177 = vector.extract_strided_slice %0 {offsets = [48, 0], sizes = [8, 256], strides = [1, 1]} : vector<64x256xf32> to vector<8x256xf32>
    %cst_30 = arith.constant dense<0.000000e+00> : vector<8x256xf32>
    %178 = tpu.matmul %176, %1, %cst_30 {dimension_numbers = #tpu.dot_dimension_numbers<[1], [0], [0], [1], [0, 0, 1, 1], [], []>} : vector<8x64xf32>, vector<64x256xf32>, vector<8x256xf32> -> vector<8x256xf32>
    %179 = arith.addf %178, %177 : vector<8x256xf32>
    %180 = vector.extract_strided_slice %179 {offsets = [0, 0], sizes = [8, 64], strides = [1, 1]} : vector<8x256xf32> to vector<8x64xf32>
    %181 = arith.negf %180 : vector<8x64xf32>
    %182 = math.exp %181 : vector<8x64xf32>
    %cst_31 = arith.constant 1.000000e+00 : f32
    %183 = vector.broadcast %cst_31 : f32 to vector<8x64xf32>
    %184 = arith.addf %183, %182 : vector<8x64xf32>
    %185 = arith.divf %183, %184 : vector<8x64xf32>
    %186 = vector.extract_strided_slice %179 {offsets = [0, 64], sizes = [8, 64], strides = [1, 1]} : vector<8x256xf32> to vector<8x64xf32>
    %187 = arith.negf %186 : vector<8x64xf32>
    %188 = math.exp %187 : vector<8x64xf32>
    %cst_32 = arith.constant 1.000000e+00 : f32
    %189 = vector.broadcast %cst_32 : f32 to vector<8x64xf32>
    %190 = arith.addf %189, %188 : vector<8x64xf32>
    %191 = arith.divf %189, %190 : vector<8x64xf32>
    %192 = vector.extract_strided_slice %179 {offsets = [0, 128], sizes = [8, 64], strides = [1, 1]} : vector<8x256xf32> to vector<8x64xf32>
    %193 = math.tanh %192 : vector<8x64xf32>
    %194 = vector.extract_strided_slice %179 {offsets = [0, 192], sizes = [8, 64], strides = [1, 1]} : vector<8x256xf32> to vector<8x64xf32>
    %195 = arith.negf %194 : vector<8x64xf32>
    %196 = math.exp %195 : vector<8x64xf32>
    %cst_33 = arith.constant 1.000000e+00 : f32
    %197 = vector.broadcast %cst_33 : f32 to vector<8x64xf32>
    %198 = arith.addf %197, %196 : vector<8x64xf32>
    %199 = arith.divf %197, %198 : vector<8x64xf32>
    %200 = arith.mulf %191, %174 : vector<8x64xf32>
    %201 = arith.mulf %185, %193 : vector<8x64xf32>
    %202 = arith.addf %200, %201 : vector<8x64xf32>
    %203 = math.tanh %202 : vector<8x64xf32>
    %204 = arith.mulf %199, %203 : vector<8x64xf32>
    %205 = vector.extract_strided_slice %0 {offsets = [56, 0], sizes = [8, 256], strides = [1, 1]} : vector<64x256xf32> to vector<8x256xf32>
    %cst_34 = arith.constant dense<0.000000e+00> : vector<8x256xf32>
    %206 = tpu.matmul %204, %1, %cst_34 {dimension_numbers = #tpu.dot_dimension_numbers<[1], [0], [0], [1], [0, 0, 1, 1], [], []>} : vector<8x64xf32>, vector<64x256xf32>, vector<8x256xf32> -> vector<8x256xf32>
    %207 = arith.addf %206, %205 : vector<8x256xf32>
    %208 = vector.extract_strided_slice %207 {offsets = [0, 0], sizes = [8, 64], strides = [1, 1]} : vector<8x256xf32> to vector<8x64xf32>
    %209 = arith.negf %208 : vector<8x64xf32>
    %210 = math.exp %209 : vector<8x64xf32>
    %cst_35 = arith.constant 1.000000e+00 : f32
    %211 = vector.broadcast %cst_35 : f32 to vector<8x64xf32>
    %212 = arith.addf %211, %210 : vector<8x64xf32>
    %213 = arith.divf %211, %212 : vector<8x64xf32>
    %214 = vector.extract_strided_slice %207 {offsets = [0, 64], sizes = [8, 64], strides = [1, 1]} : vector<8x256xf32> to vector<8x64xf32>
    %215 = arith.negf %214 : vector<8x64xf32>
    %216 = math.exp %215 : vector<8x64xf32>
    %cst_36 = arith.constant 1.000000e+00 : f32
    %217 = vector.broadcast %cst_36 : f32 to vector<8x64xf32>
    %218 = arith.addf %217, %216 : vector<8x64xf32>
    %219 = arith.divf %217, %218 : vector<8x64xf32>
    %220 = vector.extract_strided_slice %207 {offsets = [0, 128], sizes = [8, 64], strides = [1, 1]} : vector<8x256xf32> to vector<8x64xf32>
    %221 = math.tanh %220 : vector<8x64xf32>
    %222 = vector.extract_strided_slice %207 {offsets = [0, 192], sizes = [8, 64], strides = [1, 1]} : vector<8x256xf32> to vector<8x64xf32>
    %223 = arith.negf %222 : vector<8x64xf32>
    %224 = math.exp %223 : vector<8x64xf32>
    %cst_37 = arith.constant 1.000000e+00 : f32
    %225 = vector.broadcast %cst_37 : f32 to vector<8x64xf32>
    %226 = arith.addf %225, %224 : vector<8x64xf32>
    %227 = arith.divf %225, %226 : vector<8x64xf32>
    %228 = arith.mulf %219, %202 : vector<8x64xf32>
    %229 = arith.mulf %213, %221 : vector<8x64xf32>
    %230 = arith.addf %228, %229 : vector<8x64xf32>
    %231 = math.tanh %230 : vector<8x64xf32>
    %232 = arith.mulf %227, %231 : vector<8x64xf32>
    %233 = vector.extract_strided_slice %0 {offsets = [56, 0], sizes = [8, 256], strides = [1, 1]} : vector<64x256xf32> to vector<8x256xf32>
    %cst_38 = arith.constant dense<0.000000e+00> : vector<8x256xf32>
    %234 = tpu.matmul %232, %1, %cst_38 {dimension_numbers = #tpu.dot_dimension_numbers<[1], [0], [0], [1], [0, 0, 1, 1], [], []>} : vector<8x64xf32>, vector<64x256xf32>, vector<8x256xf32> -> vector<8x256xf32>
    %235 = arith.addf %234, %233 : vector<8x256xf32>
    %236 = vector.extract_strided_slice %235 {offsets = [0, 0], sizes = [8, 64], strides = [1, 1]} : vector<8x256xf32> to vector<8x64xf32>
    %237 = arith.negf %236 : vector<8x64xf32>
    %238 = math.exp %237 : vector<8x64xf32>
    %cst_39 = arith.constant 1.000000e+00 : f32
    %239 = vector.broadcast %cst_39 : f32 to vector<8x64xf32>
    %240 = arith.addf %239, %238 : vector<8x64xf32>
    %241 = arith.divf %239, %240 : vector<8x64xf32>
    %242 = vector.extract_strided_slice %235 {offsets = [0, 64], sizes = [8, 64], strides = [1, 1]} : vector<8x256xf32> to vector<8x64xf32>
    %243 = arith.negf %242 : vector<8x64xf32>
    %244 = math.exp %243 : vector<8x64xf32>
    %cst_40 = arith.constant 1.000000e+00 : f32
    %245 = vector.broadcast %cst_40 : f32 to vector<8x64xf32>
    %246 = arith.addf %245, %244 : vector<8x64xf32>
    %247 = arith.divf %245, %246 : vector<8x64xf32>
    %248 = vector.extract_strided_slice %235 {offsets = [0, 128], sizes = [8, 64], strides = [1, 1]} : vector<8x256xf32> to vector<8x64xf32>
    %249 = math.tanh %248 : vector<8x64xf32>
    %250 = vector.extract_strided_slice %235 {offsets = [0, 192], sizes = [8, 64], strides = [1, 1]} : vector<8x256xf32> to vector<8x64xf32>
    %251 = arith.negf %250 : vector<8x64xf32>
    %252 = math.exp %251 : vector<8x64xf32>
    %cst_41 = arith.constant 1.000000e+00 : f32
    %253 = vector.broadcast %cst_41 : f32 to vector<8x64xf32>
    %254 = arith.addf %253, %252 : vector<8x64xf32>
    %255 = arith.divf %253, %254 : vector<8x64xf32>
    %256 = arith.mulf %247, %230 : vector<8x64xf32>
    %257 = arith.mulf %241, %249 : vector<8x64xf32>
    %258 = arith.addf %256, %257 : vector<8x64xf32>
    %259 = math.tanh %258 : vector<8x64xf32>
    %260 = arith.mulf %255, %259 : vector<8x64xf32>
    %261 = arith.select %6, %232, %260 : vector<8x64xi1>, vector<8x64xf32>
    %262 = arith.select %6, %230, %258 : vector<8x64xi1>, vector<8x64xf32>
    %263 = vector.extract_strided_slice %260 {offsets = [0, 32], sizes = [8, 32], strides = [1, 1]} : vector<8x64xf32> to vector<8x32xf32>
    %c0_42 = arith.constant 0 : index
    %c0_43 = arith.constant 0 : index
    %264 = vector.load %arg4[%c0_42, %c0_43] : memref<32x128xf32, #tpu.memory_space<vmem>>, vector<32x128xf32>
    %cst_44 = arith.constant dense<0.000000e+00> : vector<8x128xf32>
    %265 = tpu.matmul %263, %264, %cst_44 {dimension_numbers = #tpu.dot_dimension_numbers<[1], [0], [0], [1], [0, 0, 1, 1], [], []>} : vector<8x32xf32>, vector<32x128xf32>, vector<8x128xf32> -> vector<8x128xf32>
    %c0_45 = arith.constant 0 : index
    %c0_46 = arith.constant 0 : index
    %266 = vector.load %arg5[%c0_45, %c0_46] : memref<1x128xf32, #tpu.memory_space<vmem>>, vector<1x128xf32>
    %267 = vector.broadcast %266 : vector<1x128xf32> to vector<8x128xf32>
    %268 = arith.addf %265, %267 : vector<8x128xf32>
    %c0_47 = arith.constant 0 : index
    %c0_48 = arith.constant 0 : index
    %269 = vector.load %arg6[%c0_47, %c0_48] : memref<8x128xf32, #tpu.memory_space<vmem>>, vector<8x128xf32>
    tpu.vector_store %arg6[%c0_47, %c0_48], %268 {strides = array<i32>} : memref<8x128xf32, #tpu.memory_space<vmem>>, vector<8x128xf32>,
    %c0_49 = arith.constant 0 : index
    %c0_50 = arith.constant 0 : index
    %270 = vector.load %arg7[%c0_49, %c0_50] : memref<8x64xf32, #tpu.memory_space<vmem>>, vector<8x64xf32>
    tpu.vector_store %arg7[%c0_49, %c0_50], %261 {strides = array<i32>} : memref<8x64xf32, #tpu.memory_space<vmem>>, vector<8x64xf32>,
    %c0_51 = arith.constant 0 : index
    %c0_52 = arith.constant 0 : index
    %271 = vector.load %arg8[%c0_51, %c0_52] : memref<8x64xf32, #tpu.memory_space<vmem>>, vector<8x64xf32>
    tpu.vector_store %arg8[%c0_51, %c0_52], %262 {strides = array<i32>} : memref<8x64xf32, #tpu.memory_space<vmem>>, vector<8x64xf32>,
    return
  }
}

</mosaic_0001>

<llo_original>
// kernel: rnn_forward.1
$region0: #{rnn_forward.1}
  #allocation0 [shape = 'u32[]', space=smem, size = 0x4, offset = 0x4, fixed_abs, tag = 'smem constant byte address 0x4 - core index']
  #allocation1 [shape = 'u32[144,128]{1,0:T(1,128)}', space=vmem, size = 0x12000, scoped, tag = 'internal scratch']
  %s0 = inlined_call_operand.vmem [shape: f32[64,256], index: 0, kind: input, shape index: {}]
  %s1 = inlined_call_operand.vmem [shape: f32[8,64], index: 1, kind: input, shape index: {}]
  %s2 = inlined_call_operand.vmem [shape: f32[8,64], index: 2, kind: input, shape index: {}]
  %s3 = inlined_call_operand.vmem [shape: f32[64,256], index: 3, kind: input, shape index: {}]
  %s4 = inlined_call_operand.vmem [shape: f32[32,128], index: 4, kind: input, shape index: {}]
  %s5 = inlined_call_operand.vmem [shape: f32[1,128], index: 5, kind: input, shape index: {}]
  %s6 = inlined_call_operand.hbm [shape: f32[8,128], index: 6, kind: output, shape index: {0}]
  %s7 = inlined_call_operand.vmem [shape: f32[8,64], index: 7, kind: output, shape index: {1}]
  %s8 = inlined_call_operand.vmem [shape: f32[8,64], index: 8, kind: output, shape index: {2}]
  %9 = xla_tuple %s6, %s7, %s8
  %s10 = sld [smem:[#allocation0]]
  $region50: #{rnn_forward.1} parent=0
    _
  %s12 = ssub.s32 1, %s10
  %s13 = scalar_select 0, %s12, %s10
  $region1: #{rnn_forward.1} parent=0
    #allocation2 [shape = 'u8[4096]{0}', space=vmem, size = 0x1000, scoped, tag = 'output window, operand 0, single buffered']
    #allocation3 [shape = 's32[1]{0}', space=sflag, size = 0x4, scoped, tag = 'scoped memory for rnn_forward.1']
    %14 = vsyncpa [#allocation3], 0
    // Predicated region
    $region2: #{rnn_forward.1} parent=1 // pred_check
      _
    $region3: #{rnn_forward.1} parent=1 // pred_check_branch
      %16 = sbr.rel (0) target = $region5
    $region4: #{rnn_forward.1} parent=1 // pred_region
      _
    $region5: #{rnn_forward.1} parent=1 // pred_fallthru
      _
    // Predicated region
    $region6: #{rnn_forward.1} parent=1 // pred_check
      _
    $region7: #{rnn_forward.1} parent=1 // pred_check_branch
      %18 = sbr.rel (0) target = $region9
    $region8: #{rnn_forward.1} parent=1 // pred_region
      _
    $region9: #{rnn_forward.1} parent=1 // pred_fallthru
      _
    // Predicated region
    $region10: #{rnn_forward.1} parent=1 // pred_check
      _
    $region11: #{rnn_forward.1} parent=1 // pred_check_branch
      %20 = sbr.rel (0) target = $region13
    $region12: #{rnn_forward.1} parent=1 // pred_region
      _
    $region13: #{rnn_forward.1} parent=1 // pred_fallthru
      _
    // Predicated region
    $region14: #{rnn_forward.1} parent=1 // pred_check
      _
    $region15: #{rnn_forward.1} parent=1 // pred_check_branch
      %22 = sbr.rel (0) target = $region17
    $region16: #{rnn_forward.1} parent=1 // pred_region
      _
    $region17: #{rnn_forward.1} parent=1 // pred_fallthru
      _
    // Predicated region
    $region18: #{rnn_forward.1} parent=1 // pred_check
      _
    $region19: #{rnn_forward.1} parent=1 // pred_check_branch
      %24 = sbr.rel (0) target = $region21
    $region20: #{rnn_forward.1} parent=1 // pred_region
      _
    $region21: #{rnn_forward.1} parent=1 // pred_fallthru
      _
    // Predicated region
    $region22: #{rnn_forward.1} parent=1 // pred_check
      _
    $region23: #{rnn_forward.1} parent=1 // pred_check_branch
      %26 = sbr.rel (0) target = $region25
    $region24: #{rnn_forward.1} parent=1 // pred_region
      _
    $region25: #{rnn_forward.1} parent=1 // pred_fallthru
      _
    %v27 = vld [vmem:[%s0] sm:$0xff]
    %v28 = vld [vmem:[%s0 + $0x8] sm:$0xff]
    %v29 = vld [vmem:[%s0 + $0x10] sm:$0xff]
    %v30 = vld [vmem:[%s0 + $0x18] sm:$0xff]
    %v31 = vld [vmem:[%s0 + $0x20] sm:$0xff]
    %v32 = vld [vmem:[%s0 + $0x28] sm:$0xff]
    %v33 = vld [vmem:[%s0 + $0x30] sm:$0xff]
    %v34 = vld [vmem:[%s0 + $0x38] sm:$0xff]
    %v35 = vld [vmem:[%s0 + $0x40] sm:$0xff]
    %v36 = vld [vmem:[%s0 + $0x48] sm:$0xff]
    %v37 = vld [vmem:[%s0 + $0x50] sm:$0xff]
    %v38 = vld [vmem:[%s0 + $0x58] sm:$0xff]
    %v39 = vld [vmem:[%s0 + $0x60] sm:$0xff]
    %v40 = vld [vmem:[%s0 + $0x68] sm:$0xff]
    %v41 = vld [vmem:[%s0 + $0x70] sm:$0xff]
    %v42 = vld [vmem:[%s0 + $0x78] sm:$0xff]
    %v43 = vld [vmem:[%s3] sm:$0xff]
    %v44 = vld [vmem:[%s3 + $0x8] sm:$0xff]
    %v45 = vld [vmem:[%s3 + $0x10] sm:$0xff]
    %v46 = vld [vmem:[%s3 + $0x18] sm:$0xff]
    %v47 = vld [vmem:[%s3 + $0x20] sm:$0xff]
    %v48 = vld [vmem:[%s3 + $0x28] sm:$0xff]
    %v49 = vld [vmem:[%s3 + $0x30] sm:$0xff]
    %v50 = vld [vmem:[%s3 + $0x38] sm:$0xff]
    %v51 = vld [vmem:[%s3 + $0x40] sm:$0xff]
    %v52 = vld [vmem:[%s3 + $0x48] sm:$0xff]
    %v53 = vld [vmem:[%s3 + $0x50] sm:$0xff]
    %v54 = vld [vmem:[%s3 + $0x58] sm:$0xff]
    %v55 = vld [vmem:[%s3 + $0x60] sm:$0xff]
    %v56 = vld [vmem:[%s3 + $0x68] sm:$0xff]
    %v57 = vld [vmem:[%s3 + $0x70] sm:$0xff]
    %v58 = vld [vmem:[%s3 + $0x78] sm:$0xff]
    %v59 = vld [vmem:[%s1] sm:$0xff]
    %v60 = vld [vmem:[%s2] sm:$0xff]
    %v61 = vlaneseq
    %v62 = vand.u32 %v61, 127
    %vm63 = vcmp.lt.s32.totalorder %v62, 32
    %vm64 = vcmask 523264
    %v66 = vsel %vm64, %v59, 0
    %68 = vmatprep.subr.mxu0 %v44
    %69 = vmatpush1.msra.mxu0 %v43
    %70 = vmatprep.subr.mxu0 %v46
    %71 = vmatpush1.msra.mxu0 %v45
    %72 = vmatprep.subr.mxu0 %v48
    %73 = vmatpush1.msra.mxu0 %v47
    %74 = vmatprep.subr.mxu0 %v50
    %75 = vmatpush1.msra.mxu0 %v49
    %76 = vmatprep.subr.mxu0 %v52
    %77 = vmatpush1.msra.mxu0 %v51
    %78 = vmatprep.subr.mxu0 %v54
    %79 = vmatpush1.msra.mxu0 %v53
    %80 = vmatprep.subr.mxu0 %v56
    %81 = vmatpush1.msra.mxu0 %v55
    %82 = vmatprep.subr.mxu0 %v58
    %83 = vmatpush1.msra.mxu0 %v57
    %84 = vmatprep.subr.mxu0 0.0
    %85 = vmatpush1.msra.mxu0 0.0
    %86 = vmatprep.subr.mxu0 0.0
    %87 = vmatpush1.msra.mxu0 0.0
    %88 = vmatprep.subr.mxu0 0.0
    %89 = vmatpush1.msra.mxu0 0.0
    %90 = vmatprep.subr.mxu0 0.0
    %91 = vmatpush1.msra.mxu0 0.0
    %92 = vmatprep.subr.mxu0 0.0
    %93 = vmatpush1.msra.mxu0 0.0
    %94 = vmatprep.subr.mxu0 0.0
    %95 = vmatpush1.msra.mxu0 0.0
    %96 = vmatprep.subr.mxu0 0.0
    %97 = vmatpush1.msra.mxu0 0.0
    %98 = vmatprep.subr.mxu0 0.0
    %99 = vmatpush1.msra.mxu0 0.0
    %100 = vmatprep.subr.mxu0 0.0
    %101 = vmatpush1.msra.mxu0 0.0
    %102 = vmatprep.subr.mxu0 0.0
    %103 = vmatpush1.msra.mxu0 0.0
    %104 = vmatprep.subr.mxu0 0.0
    %105 = vmatpush1.msra.mxu0 0.0
    %106 = vmatprep.subr.mxu0 0.0
    %107 = vmatpush1.msra.mxu0 0.0
    %108 = vmatprep.subr.mxu0 0.0
    %109 = vmatpush1.msra.mxu0 0.0
    %110 = vmatprep.subr.mxu0 0.0
    %111 = vmatpush1.msra.mxu0 0.0
    %112 = vmatprep.subr.mxu0 0.0
    %113 = vmatpush1.msra.mxu0 0.0
    %114 = vmatprep.subr.mxu0 0.0
    %115 = vmatpush1.msra.mxu0 0.0
    %116 = vmatprep.subr.mxu0 0.0
    %117 = vmatpush1.msra.mxu0 0.0
    %118 = vmatprep.subr.mxu0 0.0
    %119 = vmatpush1.msra.mxu0 0.0
    %120 = vmatprep.subr.mxu0 0.0
    %121 = vmatpush1.msra.mxu0 0.0
    %122 = vmatprep.subr.mxu0 0.0
    %123 = vmatpush1.msra.mxu0 0.0
    %124 = vmatprep.subr.mxu0 0.0
    %125 = vmatpush1.msra.mxu0 0.0
    %126 = vmatprep.subr.mxu0 0.0
    %127 = vmatpush1.msra.mxu0 0.0
    %128 = vmatprep.subr.mxu0 0.0
    %129 = vmatpush1.msra.mxu0 0.0
    %130 = vmatprep.subr.mxu0 0.0
    %131 = vmatpush1.msra.mxu0 0.0
    %132 = vmatprep.mubr.f32.mxu0 0.0
    %133 = vmatmul.mubr.f32.gmra.mrb[0].mxu0 %v66
    %v134 = vpop.f32.mrb[0].mxu0
    %v135 = vadd.f32 %v27, %v134
    %v136 = vpop.f32.mrb[0].mxu0
    %v137 = vadd.f32 %v28, %v136
    %138 = vdwg.mxu0
    %v139 = vxor.u32 %v135, 2147483648
    %v140 = vmul.f32 %v139, 1.442695
    %v141 = vpow.pop %v140
    %v142 = vadd.f32 %v141, 1.0
    %v143 = vrcp.pop %v142
    %v144 = vmul.f32 1.0, %v143
    %v145 = vtanh.pop %v137
    %v146 = vxor.u32 %v137, 2147483648
    %v147 = vmul.f32 %v146, 1.442695
    %v148 = vpow.pop %v147
    %v149 = vadd.f32 %v148, 1.0
    %v150 = vrcp.pop %v149
    %v151 = vmul.f32 1.0, %v150
    %153 = vrot.lane.b32.xlu0 %v60, 64
    %v154 = vpop.permute.xlu0 %153
    %v156 = vmul.f32 %v144, %v154
    %v157 = vmul.f32 %v144, %v145
    %159 = vrot.lane.b32.xlu0 %v157, 64
    %v160 = vpop.permute.xlu0 %159
    %v162 = vadd.f32 %v156, %v160
    %v163 = vtanh.pop %v162
    %v164 = vmul.f32 %v151, %v163
    %166 = vrot.lane.b32.xlu0 %v164, 64
    %v167 = vpop.permute.xlu0 %166
    %v169 = vsel %vm63, %v167, %v59
    %171 = vrot.lane.b32.xlu0 %v162, 64
    %v172 = vpop.permute.xlu0 %171
    %v174 = vsel %vm63, %v172, %v60
    %v176 = vsel %vm64, %v169, 0
    %178 = vmatprep.subr.mxu0 %v44
    %179 = vmatpush1.msra.mxu0 %v43
    %180 = vmatprep.subr.mxu0 %v46
    %181 = vmatpush1.msra.mxu0 %v45
    %182 = vmatprep.subr.mxu0 %v48
    %183 = vmatpush1.msra.mxu0 %v47
    %184 = vmatprep.subr.mxu0 %v50
    %185 = vmatpush1.msra.mxu0 %v49
    %186 = vmatprep.subr.mxu0 %v52
    %187 = vmatpush1.msra.mxu0 %v51
    %188 = vmatprep.subr.mxu0 %v54
    %189 = vmatpush1.msra.mxu0 %v53
    %190 = vmatprep.subr.mxu0 %v56
    %191 = vmatpush1.msra.mxu0 %v55
    %192 = vmatprep.subr.mxu0 %v58
    %193 = vmatpush1.msra.mxu0 %v57
    %194 = vmatprep.subr.mxu0 0.0
    %195 = vmatpush1.msra.mxu0 0.0
    %196 = vmatprep.subr.mxu0 0.0
    %197 = vmatpush1.msra.mxu0 0.0
    %198 = vmatprep.subr.mxu0 0.0
    %199 = vmatpush1.msra.mxu0 0.0
    %200 = vmatprep.subr.mxu0 0.0
    %201 = vmatpush1.msra.mxu0 0.0
    %202 = vmatprep.subr.mxu0 0.0
    %203 = vmatpush1.msra.mxu0 0.0
    %204 = vmatprep.subr.mxu0 0.0
    %205 = vmatpush1.msra.mxu0 0.0
    %206 = vmatprep.subr.mxu0 0.0
    %207 = vmatpush1.msra.mxu0 0.0
    %208 = vmatprep.subr.mxu0 0.0
    %209 = vmatpush1.msra.mxu0 0.0
    %210 = vmatprep.subr.mxu0 0.0
    %211 = vmatpush1.msra.mxu0 0.0
    %212 = vmatprep.subr.mxu0 0.0
    %213 = vmatpush1.msra.mxu0 0.0
    %214 = vmatprep.subr.mxu0 0.0
    %215 = vmatpush1.msra.mxu0 0.0
    %216 = vmatprep.subr.mxu0 0.0
    %217 = vmatpush1.msra.mxu0 0.0
    %218 = vmatprep.subr.mxu0 0.0
    %219 = vmatpush1.msra.mxu0 0.0
    %220 = vmatprep.subr.mxu0 0.0
    %221 = vmatpush1.msra.mxu0 0.0
    %222 = vmatprep.subr.mxu0 0.0
    %223 = vmatpush1.msra.mxu0 0.0
    %224 = vmatprep.subr.mxu0 0.0
    %225 = vmatpush1.msra.mxu0 0.0
    %226 = vmatprep.subr.mxu0 0.0
    %227 = vmatpush1.msra.mxu0 0.0
    %228 = vmatprep.subr.mxu0 0.0
    %229 = vmatpush1.msra.mxu0 0.0
    %230 = vmatprep.subr.mxu0 0.0
    %231 = vmatpush1.msra.mxu0 0.0
    %232 = vmatprep.subr.mxu0 0.0
    %233 = vmatpush1.msra.mxu0 0.0
    %234 = vmatprep.subr.mxu0 0.0
    %235 = vmatpush1.msra.mxu0 0.0
    %236 = vmatprep.subr.mxu0 0.0
    %237 = vmatpush1.msra.mxu0 0.0
    %238 = vmatprep.subr.mxu0 0.0
    %239 = vmatpush1.msra.mxu0 0.0
    %240 = vmatprep.subr.mxu0 0.0
    %241 = vmatpush1.msra.mxu0 0.0
    %242 = vmatprep.mubr.f32.mxu0 0.0
    %243 = vmatmul.mubr.f32.gmra.mrb[0].mxu0 %v176
    %v244 = vpop.f32.mrb[0].mxu0
    %v245 = vadd.f32 %v29, %v244
    %v246 = vpop.f32.mrb[0].mxu0
    %v247 = vadd.f32 %v30, %v246
    %248 = vdwg.mxu0
    %v249 = vxor.u32 %v245, 2147483648
    %v250 = vmul.f32 %v249, 1.442695
    %v251 = vpow.pop %v250
    %v252 = vadd.f32 %v251, 1.0
    %v253 = vrcp.pop %v252
    %v254 = vmul.f32 1.0, %v253
    %v255 = vtanh.pop %v247
    %v256 = vxor.u32 %v247, 2147483648
    %v257 = vmul.f32 %v256, 1.442695
    %v258 = vpow.pop %v257
    %v259 = vadd.f32 %v258, 1.0
    %v260 = vrcp.pop %v259
    %v261 = vmul.f32 1.0, %v260
    %263 = vrot.lane.b32.xlu0 %v174, 64
    %v264 = vpop.permute.xlu0 %263
    %v266 = vmul.f32 %v254, %v264
    %v267 = vmul.f32 %v254, %v255
    %269 = vrot.lane.b32.xlu0 %v267, 64
    %v270 = vpop.permute.xlu0 %269
    %v272 = vadd.f32 %v266, %v270
    %v273 = vtanh.pop %v272
    %v274 = vmul.f32 %v261, %v273
    %276 = vrot.lane.b32.xlu0 %v274, 64
    %v277 = vpop.permute.xlu0 %276
    %v278 = vsel %vm64, %v277, 0
    %280 = vmatprep.subr.mxu0 %v44
    %281 = vmatpush1.msra.mxu0 %v43
    %282 = vmatprep.subr.mxu0 %v46
    %283 = vmatpush1.msra.mxu0 %v45
    %284 = vmatprep.subr.mxu0 %v48
    %285 = vmatpush1.msra.mxu0 %v47
    %286 = vmatprep.subr.mxu0 %v50
    %287 = vmatpush1.msra.mxu0 %v49
    %288 = vmatprep.subr.mxu0 %v52
    %289 = vmatpush1.msra.mxu0 %v51
    %290 = vmatprep.subr.mxu0 %v54
    %291 = vmatpush1.msra.mxu0 %v53
    %292 = vmatprep.subr.mxu0 %v56
    %293 = vmatpush1.msra.mxu0 %v55
    %294 = vmatprep.subr.mxu0 %v58
    %295 = vmatpush1.msra.mxu0 %v57
    %296 = vmatprep.subr.mxu0 0.0
    %297 = vmatpush1.msra.mxu0 0.0
    %298 = vmatprep.subr.mxu0 0.0
    %299 = vmatpush1.msra.mxu0 0.0
    %300 = vmatprep.subr.mxu0 0.0
    %301 = vmatpush1.msra.mxu0 0.0
    %302 = vmatprep.subr.mxu0 0.0
    %303 = vmatpush1.msra.mxu0 0.0
    %304 = vmatprep.subr.mxu0 0.0
    %305 = vmatpush1.msra.mxu0 0.0
    %306 = vmatprep.subr.mxu0 0.0
    %307 = vmatpush1.msra.mxu0 0.0
    %308 = vmatprep.subr.mxu0 0.0
    %309 = vmatpush1.msra.mxu0 0.0
    %310 = vmatprep.subr.mxu0 0.0
    %311 = vmatpush1.msra.mxu0 0.0
    %312 = vmatprep.subr.mxu0 0.0
    %313 = vmatpush1.msra.mxu0 0.0
    %314 = vmatprep.subr.mxu0 0.0
    %315 = vmatpush1.msra.mxu0 0.0
    %316 = vmatprep.subr.mxu0 0.0
    %317 = vmatpush1.msra.mxu0 0.0
    %318 = vmatprep.subr.mxu0 0.0
    %319 = vmatpush1.msra.mxu0 0.0
    %320 = vmatprep.subr.mxu0 0.0
    %321 = vmatpush1.msra.mxu0 0.0
    %322 = vmatprep.subr.mxu0 0.0
    %323 = vmatpush1.msra.mxu0 0.0
    %324 = vmatprep.subr.mxu0 0.0
    %325 = vmatpush1.msra.mxu0 0.0
    %326 = vmatprep.subr.mxu0 0.0
    %327 = vmatpush1.msra.mxu0 0.0
    %328 = vmatprep.subr.mxu0 0.0
    %329 = vmatpush1.msra.mxu0 0.0
    %330 = vmatprep.subr.mxu0 0.0
    %331 = vmatpush1.msra.mxu0 0.0
    %332 = vmatprep.subr.mxu0 0.0
    %333 = vmatpush1.msra.mxu0 0.0
    %334 = vmatprep.subr.mxu0 0.0
    %335 = vmatpush1.msra.mxu0 0.0
    %336 = vmatprep.subr.mxu0 0.0
    %337 = vmatpush1.msra.mxu0 0.0
    %338 = vmatprep.subr.mxu0 0.0
    %339 = vmatpush1.msra.mxu0 0.0
    %340 = vmatprep.subr.mxu0 0.0
    %341 = vmatpush1.msra.mxu0 0.0
    %342 = vmatprep.subr.mxu0 0.0
    %343 = vmatpush1.msra.mxu0 0.0
    %344 = vmatprep.mubr.f32.mxu0 0.0
    %345 = vmatmul.mubr.f32.gmra.mrb[0].mxu0 %v278
    %v346 = vpop.f32.mrb[0].mxu0
    %v347 = vadd.f32 %v31, %v346
    %v348 = vpop.f32.mrb[0].mxu0
    %v349 = vadd.f32 %v32, %v348
    %350 = vdwg.mxu0
    %v351 = vxor.u32 %v347, 2147483648
    %v352 = vmul.f32 %v351, 1.442695
    %v353 = vpow.pop %v352
    %v354 = vadd.f32 %v353, 1.0
    %v355 = vrcp.pop %v354
    %v356 = vmul.f32 1.0, %v355
    %v357 = vtanh.pop %v349
    %v358 = vxor.u32 %v349, 2147483648
    %v359 = vmul.f32 %v358, 1.442695
    %v360 = vpow.pop %v359
    %v361 = vadd.f32 %v360, 1.0
    %v362 = vrcp.pop %v361
    %v363 = vmul.f32 1.0, %v362
    %v364 = vmul.f32 %v356, %v272
    %v365 = vmul.f32 %v356, %v357
    %367 = vrot.lane.b32.xlu0 %v365, 64
    %v368 = vpop.permute.xlu0 %367
    %v370 = vadd.f32 %v364, %v368
    %v371 = vtanh.pop %v370
    %v372 = vmul.f32 %v363, %v371
    %374 = vrot.lane.b32.xlu0 %v372, 64
    %v375 = vpop.permute.xlu0 %374
    %v376 = vsel %vm64, %v375, 0
    %378 = vmatprep.subr.mxu0 %v44
    %379 = vmatpush1.msra.mxu0 %v43
    %380 = vmatprep.subr.mxu0 %v46
    %381 = vmatpush1.msra.mxu0 %v45
    %382 = vmatprep.subr.mxu0 %v48
    %383 = vmatpush1.msra.mxu0 %v47
    %384 = vmatprep.subr.mxu0 %v50
    %385 = vmatpush1.msra.mxu0 %v49
    %386 = vmatprep.subr.mxu0 %v52
    %387 = vmatpush1.msra.mxu0 %v51
    %388 = vmatprep.subr.mxu0 %v54
    %389 = vmatpush1.msra.mxu0 %v53
    %390 = vmatprep.subr.mxu0 %v56
    %391 = vmatpush1.msra.mxu0 %v55
    %392 = vmatprep.subr.mxu0 %v58
    %393 = vmatpush1.msra.mxu0 %v57
    %394 = vmatprep.subr.mxu0 0.0
    %395 = vmatpush1.msra.mxu0 0.0
    %396 = vmatprep.subr.mxu0 0.0
    %397 = vmatpush1.msra.mxu0 0.0
    %398 = vmatprep.subr.mxu0 0.0
    %399 = vmatpush1.msra.mxu0 0.0
    %400 = vmatprep.subr.mxu0 0.0
    %401 = vmatpush1.msra.mxu0 0.0
    %402 = vmatprep.subr.mxu0 0.0
    %403 = vmatpush1.msra.mxu0 0.0
    %404 = vmatprep.subr.mxu0 0.0
    %405 = vmatpush1.msra.mxu0 0.0
    %406 = vmatprep.subr.mxu0 0.0
    %407 = vmatpush1.msra.mxu0 0.0
    %408 = vmatprep.subr.mxu0 0.0
    %409 = vmatpush1.msra.mxu0 0.0
    %410 = vmatprep.subr.mxu0 0.0
    %411 = vmatpush1.msra.mxu0 0.0
    %412 = vmatprep.subr.mxu0 0.0
    %413 = vmatpush1.msra.mxu0 0.0
    %414 = vmatprep.subr.mxu0 0.0
    %415 = vmatpush1.msra.mxu0 0.0
    %416 = vmatprep.subr.mxu0 0.0
    %417 = vmatpush1.msra.mxu0 0.0
    %418 = vmatprep.subr.mxu0 0.0
    %419 = vmatpush1.msra.mxu0 0.0
    %420 = vmatprep.subr.mxu0 0.0
    %421 = vmatpush1.msra.mxu0 0.0
    %422 = vmatprep.subr.mxu0 0.0
    %423 = vmatpush1.msra.mxu0 0.0
    %424 = vmatprep.subr.mxu0 0.0
    %425 = vmatpush1.msra.mxu0 0.0
    %426 = vmatprep.subr.mxu0 0.0
    %427 = vmatpush1.msra.mxu0 0.0
    %428 = vmatprep.subr.mxu0 0.0
    %429 = vmatpush1.msra.mxu0 0.0
    %430 = vmatprep.subr.mxu0 0.0
    %431 = vmatpush1.msra.mxu0 0.0
    %432 = vmatprep.subr.mxu0 0.0
    %433 = vmatpush1.msra.mxu0 0.0
    %434 = vmatprep.subr.mxu0 0.0
    %435 = vmatpush1.msra.mxu0 0.0
    %436 = vmatprep.subr.mxu0 0.0
    %437 = vmatpush1.msra.mxu0 0.0
    %438 = vmatprep.subr.mxu0 0.0
    %439 = vmatpush1.msra.mxu0 0.0
    %440 = vmatprep.subr.mxu0 0.0
    %441 = vmatpush1.msra.mxu0 0.0
    %442 = vmatprep.mubr.f32.mxu0 0.0
    %443 = vmatmul.mubr.f32.gmra.mrb[0].mxu0 %v376
    %v444 = vpop.f32.mrb[0].mxu0
    %v445 = vadd.f32 %v33, %v444
    %v446 = vpop.f32.mrb[0].mxu0
    %v447 = vadd.f32 %v34, %v446
    %448 = vdwg.mxu0
    %v449 = vxor.u32 %v445, 2147483648
    %v450 = vmul.f32 %v449, 1.442695
    %v451 = vpow.pop %v450
    %v452 = vadd.f32 %v451, 1.0
    %v453 = vrcp.pop %v452
    %v454 = vmul.f32 1.0, %v453
    %v455 = vtanh.pop %v447
    %v456 = vxor.u32 %v447, 2147483648
    %v457 = vmul.f32 %v456, 1.442695
    %v458 = vpow.pop %v457
    %v459 = vadd.f32 %v458, 1.0
    %v460 = vrcp.pop %v459
    %v461 = vmul.f32 1.0, %v460
    %v462 = vmul.f32 %v454, %v370
    %v463 = vmul.f32 %v454, %v455
    %465 = vrot.lane.b32.xlu0 %v463, 64
    %v466 = vpop.permute.xlu0 %465
    %v468 = vadd.f32 %v462, %v466
    %v469 = vtanh.pop %v468
    %v470 = vmul.f32 %v461, %v469
    %472 = vrot.lane.b32.xlu0 %v470, 64
    %v473 = vpop.permute.xlu0 %472
    %v474 = vsel %vm64, %v473, 0
    %476 = vmatprep.subr.mxu0 %v44
    %477 = vmatpush1.msra.mxu0 %v43
    %478 = vmatprep.subr.mxu0 %v46
    %479 = vmatpush1.msra.mxu0 %v45
    %480 = vmatprep.subr.mxu0 %v48
    %481 = vmatpush1.msra.mxu0 %v47
    %482 = vmatprep.subr.mxu0 %v50
    %483 = vmatpush1.msra.mxu0 %v49
    %484 = vmatprep.subr.mxu0 %v52
    %485 = vmatpush1.msra.mxu0 %v51
    %486 = vmatprep.subr.mxu0 %v54
    %487 = vmatpush1.msra.mxu0 %v53
    %488 = vmatprep.subr.mxu0 %v56
    %489 = vmatpush1.msra.mxu0 %v55
    %490 = vmatprep.subr.mxu0 %v58
    %491 = vmatpush1.msra.mxu0 %v57
    %492 = vmatprep.subr.mxu0 0.0
    %493 = vmatpush1.msra.mxu0 0.0
    %494 = vmatprep.subr.mxu0 0.0
    %495 = vmatpush1.msra.mxu0 0.0
    %496 = vmatprep.subr.mxu0 0.0
    %497 = vmatpush1.msra.mxu0 0.0
    %498 = vmatprep.subr.mxu0 0.0
    %499 = vmatpush1.msra.mxu0 0.0
    %500 = vmatprep.subr.mxu0 0.0
    %501 = vmatpush1.msra.mxu0 0.0
    %502 = vmatprep.subr.mxu0 0.0
    %503 = vmatpush1.msra.mxu0 0.0
    %504 = vmatprep.subr.mxu0 0.0
    %505 = vmatpush1.msra.mxu0 0.0
    %506 = vmatprep.subr.mxu0 0.0
    %507 = vmatpush1.msra.mxu0 0.0
    %508 = vmatprep.subr.mxu0 0.0
    %509 = vmatpush1.msra.mxu0 0.0
    %510 = vmatprep.subr.mxu0 0.0
    %511 = vmatpush1.msra.mxu0 0.0
    %512 = vmatprep.subr.mxu0 0.0
    %513 = vmatpush1.msra.mxu0 0.0
    %514 = vmatprep.subr.mxu0 0.0
    %515 = vmatpush1.msra.mxu0 0.0
    %516 = vmatprep.subr.mxu0 0.0
    %517 = vmatpush1.msra.mxu0 0.0
    %518 = vmatprep.subr.mxu0 0.0
    %519 = vmatpush1.msra.mxu0 0.0
    %520 = vmatprep.subr.mxu0 0.0
    %521 = vmatpush1.msra.mxu0 0.0
    %522 = vmatprep.subr.mxu0 0.0
    %523 = vmatpush1.msra.mxu0 0.0
    %524 = vmatprep.subr.mxu0 0.0
    %525 = vmatpush1.msra.mxu0 0.0
    %526 = vmatprep.subr.mxu0 0.0
    %527 = vmatpush1.msra.mxu0 0.0
    %528 = vmatprep.subr.mxu0 0.0
    %529 = vmatpush1.msra.mxu0 0.0
    %530 = vmatprep.subr.mxu0 0.0
    %531 = vmatpush1.msra.mxu0 0.0
    %532 = vmatprep.subr.mxu0 0.0
    %533 = vmatpush1.msra.mxu0 0.0
    %534 = vmatprep.subr.mxu0 0.0
    %535 = vmatpush1.msra.mxu0 0.0
    %536 = vmatprep.subr.mxu0 0.0
    %537 = vmatpush1.msra.mxu0 0.0
    %538 = vmatprep.subr.mxu0 0.0
    %539 = vmatpush1.msra.mxu0 0.0
    %540 = vmatprep.mubr.f32.mxu0 0.0
    %541 = vmatmul.mubr.f32.gmra.mrb[0].mxu0 %v474
    %v542 = vpop.f32.mrb[0].mxu0
    %v543 = vadd.f32 %v35, %v542
    %v544 = vpop.f32.mrb[0].mxu0
    %v545 = vadd.f32 %v36, %v544
    %546 = vdwg.mxu0
    %v547 = vxor.u32 %v543, 2147483648
    %v548 = vmul.f32 %v547, 1.442695
    %v549 = vpow.pop %v548
    %v550 = vadd.f32 %v549, 1.0
    %v551 = vrcp.pop %v550
    %v552 = vmul.f32 1.0, %v551
    %v553 = vtanh.pop %v545
    %v554 = vxor.u32 %v545, 2147483648
    %v555 = vmul.f32 %v554, 1.442695
    %v556 = vpow.pop %v555
    %v557 = vadd.f32 %v556, 1.0
    %v558 = vrcp.pop %v557
    %v559 = vmul.f32 1.0, %v558
    %v560 = vmul.f32 %v552, %v468
    %v561 = vmul.f32 %v552, %v553
    %563 = vrot.lane.b32.xlu0 %v561, 64
    %v564 = vpop.permute.xlu0 %563
    %v566 = vadd.f32 %v560, %v564
    %v567 = vtanh.pop %v566
    %v568 = vmul.f32 %v559, %v567
    %570 = vrot.lane.b32.xlu0 %v568, 64
    %v571 = vpop.permute.xlu0 %570
    %v572 = vsel %vm64, %v571, 0
    %574 = vmatprep.subr.mxu0 %v44
    %575 = vmatpush1.msra.mxu0 %v43
    %576 = vmatprep.subr.mxu0 %v46
    %577 = vmatpush1.msra.mxu0 %v45
    %578 = vmatprep.subr.mxu0 %v48
    %579 = vmatpush1.msra.mxu0 %v47
    %580 = vmatprep.subr.mxu0 %v50
    %581 = vmatpush1.msra.mxu0 %v49
    %582 = vmatprep.subr.mxu0 %v52
    %583 = vmatpush1.msra.mxu0 %v51
    %584 = vmatprep.subr.mxu0 %v54
    %585 = vmatpush1.msra.mxu0 %v53
    %586 = vmatprep.subr.mxu0 %v56
    %587 = vmatpush1.msra.mxu0 %v55
    %588 = vmatprep.subr.mxu0 %v58
    %589 = vmatpush1.msra.mxu0 %v57
    %590 = vmatprep.subr.mxu0 0.0
    %591 = vmatpush1.msra.mxu0 0.0
    %592 = vmatprep.subr.mxu0 0.0
    %593 = vmatpush1.msra.mxu0 0.0
    %594 = vmatprep.subr.mxu0 0.0
    %595 = vmatpush1.msra.mxu0 0.0
    %596 = vmatprep.subr.mxu0 0.0
    %597 = vmatpush1.msra.mxu0 0.0
    %598 = vmatprep.subr.mxu0 0.0
    %599 = vmatpush1.msra.mxu0 0.0
    %600 = vmatprep.subr.mxu0 0.0
    %601 = vmatpush1.msra.mxu0 0.0
    %602 = vmatprep.subr.mxu0 0.0
    %603 = vmatpush1.msra.mxu0 0.0
    %604 = vmatprep.subr.mxu0 0.0
    %605 = vmatpush1.msra.mxu0 0.0
    %606 = vmatprep.subr.mxu0 0.0
    %607 = vmatpush1.msra.mxu0 0.0
    %608 = vmatprep.subr.mxu0 0.0
    %609 = vmatpush1.msra.mxu0 0.0
    %610 = vmatprep.subr.mxu0 0.0
    %611 = vmatpush1.msra.mxu0 0.0
    %612 = vmatprep.subr.mxu0 0.0
    %613 = vmatpush1.msra.mxu0 0.0
    %614 = vmatprep.subr.mxu0 0.0
    %615 = vmatpush1.msra.mxu0 0.0
    %616 = vmatprep.subr.mxu0 0.0
    %617 = vmatpush1.msra.mxu0 0.0
    %618 = vmatprep.subr.mxu0 0.0
    %619 = vmatpush1.msra.mxu0 0.0
    %620 = vmatprep.subr.mxu0 0.0
    %621 = vmatpush1.msra.mxu0 0.0
    %622 = vmatprep.subr.mxu0 0.0
    %623 = vmatpush1.msra.mxu0 0.0
    %624 = vmatprep.subr.mxu0 0.0
    %625 = vmatpush1.msra.mxu0 0.0
    %626 = vmatprep.subr.mxu0 0.0
    %627 = vmatpush1.msra.mxu0 0.0
    %628 = vmatprep.subr.mxu0 0.0
    %629 = vmatpush1.msra.mxu0 0.0
    %630 = vmatprep.subr.mxu0 0.0
    %631 = vmatpush1.msra.mxu0 0.0
    %632 = vmatprep.subr.mxu0 0.0
    %633 = vmatpush1.msra.mxu0 0.0
    %634 = vmatprep.subr.mxu0 0.0
    %635 = vmatpush1.msra.mxu0 0.0
    %636 = vmatprep.subr.mxu0 0.0
    %637 = vmatpush1.msra.mxu0 0.0
    %638 = vmatprep.mubr.f32.mxu0 0.0
    %639 = vmatmul.mubr.f32.gmra.mrb[0].mxu0 %v572
    %v640 = vpop.f32.mrb[0].mxu0
    %v641 = vadd.f32 %v37, %v640
    %v642 = vpop.f32.mrb[0].mxu0
    %v643 = vadd.f32 %v38, %v642
    %644 = vdwg.mxu0
    %v645 = vxor.u32 %v641, 2147483648
    %v646 = vmul.f32 %v645, 1.442695
    %v647 = vpow.pop %v646
    %v648 = vadd.f32 %v647, 1.0
    %v649 = vrcp.pop %v648
    %v650 = vmul.f32 1.0, %v649
    %v651 = vtanh.pop %v643
    %v652 = vxor.u32 %v643, 2147483648
    %v653 = vmul.f32 %v652, 1.442695
    %v654 = vpow.pop %v653
    %v655 = vadd.f32 %v654, 1.0
    %v656 = vrcp.pop %v655
    %v657 = vmul.f32 1.0, %v656
    %v658 = vmul.f32 %v650, %v566
    %v659 = vmul.f32 %v650, %v651
    %661 = vrot.lane.b32.xlu0 %v659, 64
    %v662 = vpop.permute.xlu0 %661
    %v664 = vadd.f32 %v658, %v662
    %v665 = vtanh.pop %v664
    %v666 = vmul.f32 %v657, %v665
    %668 = vrot.lane.b32.xlu0 %v666, 64
    %v669 = vpop.permute.xlu0 %668
    %v670 = vsel %vm64, %v669, 0
    %672 = vmatprep.subr.mxu0 %v44
    %673 = vmatpush1.msra.mxu0 %v43
    %674 = vmatprep.subr.mxu0 %v46
    %675 = vmatpush1.msra.mxu0 %v45
    %676 = vmatprep.subr.mxu0 %v48
    %677 = vmatpush1.msra.mxu0 %v47
    %678 = vmatprep.subr.mxu0 %v50
    %679 = vmatpush1.msra.mxu0 %v49
    %680 = vmatprep.subr.mxu0 %v52
    %681 = vmatpush1.msra.mxu0 %v51
    %682 = vmatprep.subr.mxu0 %v54
    %683 = vmatpush1.msra.mxu0 %v53
    %684 = vmatprep.subr.mxu0 %v56
    %685 = vmatpush1.msra.mxu0 %v55
    %686 = vmatprep.subr.mxu0 %v58
    %687 = vmatpush1.msra.mxu0 %v57
    %688 = vmatprep.subr.mxu0 0.0
    %689 = vmatpush1.msra.mxu0 0.0
    %690 = vmatprep.subr.mxu0 0.0
    %691 = vmatpush1.msra.mxu0 0.0
    %692 = vmatprep.subr.mxu0 0.0
    %693 = vmatpush1.msra.mxu0 0.0
    %694 = vmatprep.subr.mxu0 0.0
    %695 = vmatpush1.msra.mxu0 0.0
    %696 = vmatprep.subr.mxu0 0.0
    %697 = vmatpush1.msra.mxu0 0.0
    %698 = vmatprep.subr.mxu0 0.0
    %699 = vmatpush1.msra.mxu0 0.0
    %700 = vmatprep.subr.mxu0 0.0
    %701 = vmatpush1.msra.mxu0 0.0
    %702 = vmatprep.subr.mxu0 0.0
    %703 = vmatpush1.msra.mxu0 0.0
    %704 = vmatprep.subr.mxu0 0.0
    %705 = vmatpush1.msra.mxu0 0.0
    %706 = vmatprep.subr.mxu0 0.0
    %707 = vmatpush1.msra.mxu0 0.0
    %708 = vmatprep.subr.mxu0 0.0
    %709 = vmatpush1.msra.mxu0 0.0
    %710 = vmatprep.subr.mxu0 0.0
    %711 = vmatpush1.msra.mxu0 0.0
    %712 = vmatprep.subr.mxu0 0.0
    %713 = vmatpush1.msra.mxu0 0.0
    %714 = vmatprep.subr.mxu0 0.0
    %715 = vmatpush1.msra.mxu0 0.0
    %716 = vmatprep.subr.mxu0 0.0
    %717 = vmatpush1.msra.mxu0 0.0
    %718 = vmatprep.subr.mxu0 0.0
    %719 = vmatpush1.msra.mxu0 0.0
    %720 = vmatprep.subr.mxu0 0.0
    %721 = vmatpush1.msra.mxu0 0.0
    %722 = vmatprep.subr.mxu0 0.0
    %723 = vmatpush1.msra.mxu0 0.0
    %724 = vmatprep.subr.mxu0 0.0
    %725 = vmatpush1.msra.mxu0 0.0
    %726 = vmatprep.subr.mxu0 0.0
    %727 = vmatpush1.msra.mxu0 0.0
    %728 = vmatprep.subr.mxu0 0.0
    %729 = vmatpush1.msra.mxu0 0.0
    %730 = vmatprep.subr.mxu0 0.0
    %731 = vmatpush1.msra.mxu0 0.0
    %732 = vmatprep.subr.mxu0 0.0
    %733 = vmatpush1.msra.mxu0 0.0
    %734 = vmatprep.subr.mxu0 0.0
    %735 = vmatpush1.msra.mxu0 0.0
    %736 = vmatprep.mubr.f32.mxu0 0.0
    %737 = vmatmul.mubr.f32.gmra.mrb[0].mxu0 %v670
    %v738 = vpop.f32.mrb[0].mxu0
    %v739 = vadd.f32 %v39, %v738
    %v740 = vpop.f32.mrb[0].mxu0
    %v741 = vadd.f32 %v40, %v740
    %742 = vdwg.mxu0
    %v743 = vxor.u32 %v739, 2147483648
    %v744 = vmul.f32 %v743, 1.442695
    %v745 = vpow.pop %v744
    %v746 = vadd.f32 %v745, 1.0
    %v747 = vrcp.pop %v746
    %v748 = vmul.f32 1.0, %v747
    %v749 = vtanh.pop %v741
    %v750 = vxor.u32 %v741, 2147483648
    %v751 = vmul.f32 %v750, 1.442695
    %v752 = vpow.pop %v751
    %v753 = vadd.f32 %v752, 1.0
    %v754 = vrcp.pop %v753
    %v755 = vmul.f32 1.0, %v754
    %v756 = vmul.f32 %v748, %v664
    %v757 = vmul.f32 %v748, %v749
    %759 = vrot.lane.b32.xlu0 %v757, 64
    %v760 = vpop.permute.xlu0 %759
    %v762 = vadd.f32 %v756, %v760
    %v763 = vtanh.pop %v762
    %v764 = vmul.f32 %v755, %v763
    %766 = vrot.lane.b32.xlu0 %v764, 64
    %v767 = vpop.permute.xlu0 %766
    %v768 = vsel %vm64, %v767, 0
    %770 = vmatprep.subr.mxu0 %v44
    %771 = vmatpush1.msra.mxu0 %v43
    %772 = vmatprep.subr.mxu0 %v46
    %773 = vmatpush1.msra.mxu0 %v45
    %774 = vmatprep.subr.mxu0 %v48
    %775 = vmatpush1.msra.mxu0 %v47
    %776 = vmatprep.subr.mxu0 %v50
    %777 = vmatpush1.msra.mxu0 %v49
    %778 = vmatprep.subr.mxu0 %v52
    %779 = vmatpush1.msra.mxu0 %v51
    %780 = vmatprep.subr.mxu0 %v54
    %781 = vmatpush1.msra.mxu0 %v53
    %782 = vmatprep.subr.mxu0 %v56
    %783 = vmatpush1.msra.mxu0 %v55
    %784 = vmatprep.subr.mxu0 %v58
    %785 = vmatpush1.msra.mxu0 %v57
    %786 = vmatprep.subr.mxu0 0.0
    %787 = vmatpush1.msra.mxu0 0.0
    %788 = vmatprep.subr.mxu0 0.0
    %789 = vmatpush1.msra.mxu0 0.0
    %790 = vmatprep.subr.mxu0 0.0
    %791 = vmatpush1.msra.mxu0 0.0
    %792 = vmatprep.subr.mxu0 0.0
    %793 = vmatpush1.msra.mxu0 0.0
    %794 = vmatprep.subr.mxu0 0.0
    %795 = vmatpush1.msra.mxu0 0.0
    %796 = vmatprep.subr.mxu0 0.0
    %797 = vmatpush1.msra.mxu0 0.0
    %798 = vmatprep.subr.mxu0 0.0
    %799 = vmatpush1.msra.mxu0 0.0
    %800 = vmatprep.subr.mxu0 0.0
    %801 = vmatpush1.msra.mxu0 0.0
    %802 = vmatprep.subr.mxu0 0.0
    %803 = vmatpush1.msra.mxu0 0.0
    %804 = vmatprep.subr.mxu0 0.0
    %805 = vmatpush1.msra.mxu0 0.0
    %806 = vmatprep.subr.mxu0 0.0
    %807 = vmatpush1.msra.mxu0 0.0
    %808 = vmatprep.subr.mxu0 0.0
    %809 = vmatpush1.msra.mxu0 0.0
    %810 = vmatprep.subr.mxu0 0.0
    %811 = vmatpush1.msra.mxu0 0.0
    %812 = vmatprep.subr.mxu0 0.0
    %813 = vmatpush1.msra.mxu0 0.0
    %814 = vmatprep.subr.mxu0 0.0
    %815 = vmatpush1.msra.mxu0 0.0
    %816 = vmatprep.subr.mxu0 0.0
    %817 = vmatpush1.msra.mxu0 0.0
    %818 = vmatprep.subr.mxu0 0.0
    %819 = vmatpush1.msra.mxu0 0.0
    %820 = vmatprep.subr.mxu0 0.0
    %821 = vmatpush1.msra.mxu0 0.0
    %822 = vmatprep.subr.mxu0 0.0
    %823 = vmatpush1.msra.mxu0 0.0
    %824 = vmatprep.subr.mxu0 0.0
    %825 = vmatpush1.msra.mxu0 0.0
    %826 = vmatprep.subr.mxu0 0.0
    %827 = vmatpush1.msra.mxu0 0.0
    %828 = vmatprep.subr.mxu0 0.0
    %829 = vmatpush1.msra.mxu0 0.0
    %830 = vmatprep.subr.mxu0 0.0
    %831 = vmatpush1.msra.mxu0 0.0
    %832 = vmatprep.subr.mxu0 0.0
    %833 = vmatpush1.msra.mxu0 0.0
    %834 = vmatprep.mubr.f32.mxu0 0.0
    %835 = vmatmul.mubr.f32.gmra.mrb[0].mxu0 %v768
    %v836 = vpop.f32.mrb[0].mxu0
    %v837 = vadd.f32 %v41, %v836
    %v838 = vpop.f32.mrb[0].mxu0
    %v839 = vadd.f32 %v42, %v838
    %840 = vdwg.mxu0
    %v841 = vxor.u32 %v837, 2147483648
    %v842 = vmul.f32 %v841, 1.442695
    %v843 = vpow.pop %v842
    %v844 = vadd.f32 %v843, 1.0
    %v845 = vrcp.pop %v844
    %v846 = vmul.f32 1.0, %v845
    %v847 = vtanh.pop %v839
    %v848 = vxor.u32 %v839, 2147483648
    %v849 = vmul.f32 %v848, 1.442695
    %v850 = vpow.pop %v849
    %v851 = vadd.f32 %v850, 1.0
    %v852 = vrcp.pop %v851
    %v853 = vmul.f32 1.0, %v852
    %v854 = vmul.f32 %v846, %v762
    %v855 = vmul.f32 %v846, %v847
    %857 = vrot.lane.b32.xlu0 %v855, 64
    %v858 = vpop.permute.xlu0 %857
    %v860 = vadd.f32 %v854, %v858
    %v861 = vtanh.pop %v860
    %v862 = vmul.f32 %v853, %v861
    %864 = vrot.lane.b32.xlu0 %v862, 64
    %v865 = vpop.permute.xlu0 %864
    %v866 = vsel %vm64, %v865, 0
    %868 = vmatprep.subr.mxu0 %v44
    %869 = vmatpush1.msra.mxu0 %v43
    %870 = vmatprep.subr.mxu0 %v46
    %871 = vmatpush1.msra.mxu0 %v45
    %872 = vmatprep.subr.mxu0 %v48
    %873 = vmatpush1.msra.mxu0 %v47
    %874 = vmatprep.subr.mxu0 %v50
    %875 = vmatpush1.msra.mxu0 %v49
    %876 = vmatprep.subr.mxu0 %v52
    %877 = vmatpush1.msra.mxu0 %v51
    %878 = vmatprep.subr.mxu0 %v54
    %879 = vmatpush1.msra.mxu0 %v53
    %880 = vmatprep.subr.mxu0 %v56
    %881 = vmatpush1.msra.mxu0 %v55
    %882 = vmatprep.subr.mxu0 %v58
    %883 = vmatpush1.msra.mxu0 %v57
    %884 = vmatprep.subr.mxu0 0.0
    %885 = vmatpush1.msra.mxu0 0.0
    %886 = vmatprep.subr.mxu0 0.0
    %887 = vmatpush1.msra.mxu0 0.0
    %888 = vmatprep.subr.mxu0 0.0
    %889 = vmatpush1.msra.mxu0 0.0
    %890 = vmatprep.subr.mxu0 0.0
    %891 = vmatpush1.msra.mxu0 0.0
    %892 = vmatprep.subr.mxu0 0.0
    %893 = vmatpush1.msra.mxu0 0.0
    %894 = vmatprep.subr.mxu0 0.0
    %895 = vmatpush1.msra.mxu0 0.0
    %896 = vmatprep.subr.mxu0 0.0
    %897 = vmatpush1.msra.mxu0 0.0
    %898 = vmatprep.subr.mxu0 0.0
    %899 = vmatpush1.msra.mxu0 0.0
    %900 = vmatprep.subr.mxu0 0.0
    %901 = vmatpush1.msra.mxu0 0.0
    %902 = vmatprep.subr.mxu0 0.0
    %903 = vmatpush1.msra.mxu0 0.0
    %904 = vmatprep.subr.mxu0 0.0
    %905 = vmatpush1.msra.mxu0 0.0
    %906 = vmatprep.subr.mxu0 0.0
    %907 = vmatpush1.msra.mxu0 0.0
    %908 = vmatprep.subr.mxu0 0.0
    %909 = vmatpush1.msra.mxu0 0.0
    %910 = vmatprep.subr.mxu0 0.0
    %911 = vmatpush1.msra.mxu0 0.0
    %912 = vmatprep.subr.mxu0 0.0
    %913 = vmatpush1.msra.mxu0 0.0
    %914 = vmatprep.subr.mxu0 0.0
    %915 = vmatpush1.msra.mxu0 0.0
    %916 = vmatprep.subr.mxu0 0.0
    %917 = vmatpush1.msra.mxu0 0.0
    %918 = vmatprep.subr.mxu0 0.0
    %919 = vmatpush1.msra.mxu0 0.0
    %920 = vmatprep.subr.mxu0 0.0
    %921 = vmatpush1.msra.mxu0 0.0
    %922 = vmatprep.subr.mxu0 0.0
    %923 = vmatpush1.msra.mxu0 0.0
    %924 = vmatprep.subr.mxu0 0.0
    %925 = vmatpush1.msra.mxu0 0.0
    %926 = vmatprep.subr.mxu0 0.0
    %927 = vmatpush1.msra.mxu0 0.0
    %928 = vmatprep.subr.mxu0 0.0
    %929 = vmatpush1.msra.mxu0 0.0
    %930 = vmatprep.subr.mxu0 0.0
    %931 = vmatpush1.msra.mxu0 0.0
    %932 = vmatprep.mubr.f32.mxu0 0.0
    %933 = vmatmul.mubr.f32.gmra.mrb[0].mxu0 %v866
    %v934 = vpop.f32.mrb[0].mxu0
    %v935 = vadd.f32 %v41, %v934
    %v936 = vpop.f32.mrb[0].mxu0
    %v937 = vadd.f32 %v42, %v936
    %938 = vdwg.mxu0
    %v939 = vxor.u32 %v935, 2147483648
    %v940 = vmul.f32 %v939, 1.442695
    %v941 = vpow.pop %v940
    %v942 = vadd.f32 %v941, 1.0
    %v943 = vrcp.pop %v942
    %v944 = vmul.f32 1.0, %v943
    %v945 = vtanh.pop %v937
    %v946 = vxor.u32 %v937, 2147483648
    %v947 = vmul.f32 %v946, 1.442695
    %v948 = vpow.pop %v947
    %v949 = vadd.f32 %v948, 1.0
    %v950 = vrcp.pop %v949
    %v951 = vmul.f32 1.0, %v950
    %v952 = vmul.f32 %v944, %v860
    %v953 = vmul.f32 %v944, %v945
    %955 = vrot.lane.b32.xlu0 %v953, 64
    %v956 = vpop.permute.xlu0 %955
    %v958 = vadd.f32 %v952, %v956
    %v959 = vtanh.pop %v958
    %v960 = vmul.f32 %v951, %v959
    %963 = vrot.lane.b32.xlu0 %v960, 64
    %v964 = vpop.permute.xlu0 %963
    %v966 = vsel %vm63, %v865, %v964
    %968 = vrot.lane.b32.xlu0 %v860, 64
    %v969 = vpop.permute.xlu0 %968
    %972 = vrot.lane.b32.xlu0 %v958, 64
    %v973 = vpop.permute.xlu0 %972
    %v975 = vsel %vm63, %v969, %v973
    %v976 = vld [vmem:[%s4] sm:$0xff]
    %v977 = vld [vmem:[%s4 + $0x8] sm:$0xff]
    %v978 = vld [vmem:[%s4 + $0x10] sm:$0xff]
    %v979 = vld [vmem:[%s4 + $0x18] sm:$0xff]
    %v980 = vld [vmem:[%s5] sm:$0x1]
    %v982 = vlaneseq
    %v983 = vshrl.u32 %v982, 7
    %v984 = vsub.s32 0, %v983
    %v985 = vrot.slane %v980, %v984
    %987 = vrot.lane.b32.xlu0 %v960, 32
    %v988 = vpop.permute.xlu0 %987
    %vm989 = vcmask 261120
    %v990 = vsel %vm989, %v988, 0
    %992 = vmatprep.subr.mxu0 0.0
    %993 = vmatpush1.msra.mxu0 %v976
    %994 = vmatprep.subr.mxu0 0.0
    %995 = vmatpush1.msra.mxu0 %v977
    %996 = vmatprep.subr.mxu0 0.0
    %997 = vmatpush1.msra.mxu0 %v978
    %998 = vmatprep.subr.mxu0 0.0
    %999 = vmatpush1.msra.mxu0 %v979
    %1000 = vmatprep.subr.mxu0 0.0
    %1001 = vmatpush1.msra.mxu0 0.0
    %1002 = vmatprep.subr.mxu0 0.0
    %1003 = vmatpush1.msra.mxu0 0.0
    %1004 = vmatprep.subr.mxu0 0.0
    %1005 = vmatpush1.msra.mxu0 0.0
    %1006 = vmatprep.subr.mxu0 0.0
    %1007 = vmatpush1.msra.mxu0 0.0
    %1008 = vmatprep.subr.mxu0 0.0
    %1009 = vmatpush1.msra.mxu0 0.0
    %1010 = vmatprep.subr.mxu0 0.0
    %1011 = vmatpush1.msra.mxu0 0.0
    %1012 = vmatprep.subr.mxu0 0.0
    %1013 = vmatpush1.msra.mxu0 0.0
    %1014 = vmatprep.subr.mxu0 0.0
    %1015 = vmatpush1.msra.mxu0 0.0
    %1016 = vmatprep.subr.mxu0 0.0
    %1017 = vmatpush1.msra.mxu0 0.0
    %1018 = vmatprep.subr.mxu0 0.0
    %1019 = vmatpush1.msra.mxu0 0.0
    %1020 = vmatprep.subr.mxu0 0.0
    %1021 = vmatpush1.msra.mxu0 0.0
    %1022 = vmatprep.subr.mxu0 0.0
    %1023 = vmatpush1.msra.mxu0 0.0
    %1024 = vmatprep.subr.mxu0 0.0
    %1025 = vmatpush1.msra.mxu0 0.0
    %1026 = vmatprep.subr.mxu0 0.0
    %1027 = vmatpush1.msra.mxu0 0.0
    %1028 = vmatprep.subr.mxu0 0.0
    %1029 = vmatpush1.msra.mxu0 0.0
    %1030 = vmatprep.subr.mxu0 0.0
    %1031 = vmatpush1.msra.mxu0 0.0
    %1032 = vmatprep.subr.mxu0 0.0
    %1033 = vmatpush1.msra.mxu0 0.0
    %1034 = vmatprep.subr.mxu0 0.0
    %1035 = vmatpush1.msra.mxu0 0.0
    %1036 = vmatprep.subr.mxu0 0.0
    %1037 = vmatpush1.msra.mxu0 0.0
    %1038 = vmatprep.subr.mxu0 0.0
    %1039 = vmatpush1.msra.mxu0 0.0
    %1040 = vmatprep.subr.mxu0 0.0
    %1041 = vmatpush1.msra.mxu0 0.0
    %1042 = vmatprep.subr.mxu0 0.0
    %1043 = vmatpush1.msra.mxu0 0.0
    %1044 = vmatprep.subr.mxu0 0.0
    %1045 = vmatpush1.msra.mxu0 0.0
    %1046 = vmatprep.subr.mxu0 0.0
    %1047 = vmatpush1.msra.mxu0 0.0
    %1048 = vmatprep.subr.mxu0 0.0
    %1049 = vmatpush1.msra.mxu0 0.0
    %1050 = vmatprep.subr.mxu0 0.0
    %1051 = vmatpush1.msra.mxu0 0.0
    %1052 = vmatprep.subr.mxu0 0.0
    %1053 = vmatpush1.msra.mxu0 0.0
    %1054 = vmatprep.subr.mxu0 0.0
    %1055 = vmatpush1.msra.mxu0 0.0
    %1056 = vmatprep.mubr.f32.mxu0 0.0
    %1057 = vmatmul.mubr.f32.gmra.mrb[0].mxu0 %v990
    %v1058 = vpop.f32.mrb[0].mxu0
    %v1059 = vadd.f32 %v985, %v1058
    %v1060 = vpop.f32.mrb[0].mxu0
    %1061 = vdwg.mxu0
    %1062 = vst [vmem:[#allocation2] sm:$0xff] %v1059
    %1063 = vst.msk [vmem:[%s7] sm:$0xff] %vm64, %v966
    %1064 = vst.msk [vmem:[%s8] sm:$0xff] %vm64, %v975
    // Predicated region
    $region26: #{rnn_forward.1} parent=1 // pred_check
      _
    $region27: #{rnn_forward.1} parent=1 // pred_check_branch
      %1066 = sbr.rel (0) target = $region29
    $region28: #{rnn_forward.1} parent=1 // pred_region
      %s1068 = ssub.s32 128, 128
      %1069 = vsyncadd [#allocation3], %s1068
      %s1071 = sshll.u32 [#allocation2], 4
      %s1072 = int_to_ptr.vmem [resolvable:$true] %s1071
      %1074 = dma.vmem_to_hbm [thread:$0]  %s1072, 128, %s6, [#allocation3]
    $region29: #{rnn_forward.1} parent=1 // pred_fallthru
      _
    // Predicated region
    $region30: #{rnn_forward.1} parent=1 // pred_check
      _
    $region31: #{rnn_forward.1} parent=1 // pred_check_branch
      %1076 = sbr.rel (0) target = $region33
    $region32: #{rnn_forward.1} parent=1 // pred_region
      _
    $region33: #{rnn_forward.1} parent=1 // pred_fallthru
      _
    // Predicated region
    $region34: #{rnn_forward.1} parent=1 // pred_check
      _
    $region35: #{rnn_forward.1} parent=1 // pred_check_branch
      %1078 = sbr.rel (0) target = $region37
    $region36: #{rnn_forward.1} parent=1 // pred_region
      _
    $region37: #{rnn_forward.1} parent=1 // pred_fallthru
      _
    // Predicated region
    $region38: #{rnn_forward.1} parent=1 // pred_check
      _
    $region39: #{rnn_forward.1} parent=1 // pred_check_branch
      %1080 = sbr.rel (0) target = $region41
    $region40: #{rnn_forward.1} parent=1 // pred_region
      %1081 = dma.done [#allocation3], 128
    $region41: #{rnn_forward.1} parent=1 // pred_fallthru
      _
    // Predicated region
    $region42: #{rnn_forward.1} parent=1 // pred_check
      _
    $region43: #{rnn_forward.1} parent=1 // pred_check_branch
      %1083 = sbr.rel (0) target = $region45
    $region44: #{rnn_forward.1} parent=1 // pred_region
      _
    $region45: #{rnn_forward.1} parent=1 // pred_fallthru
      _
    // Predicated region
    $region46: #{rnn_forward.1} parent=1 // pred_check
      _
    $region47: #{rnn_forward.1} parent=1 // pred_check_branch
      %1085 = sbr.rel (0) target = $region49
    $region48: #{rnn_forward.1} parent=1 // pred_region
      _
    $region49: #{rnn_forward.1} parent=1 // pred_fallthru
      _
    %1086 = vsyncpa [#allocation3], 1

</llo_original>
